<compile_context>
chip_gen: v5e
topology: v5e:2x2
jax: 0.10.0
libtpu: 0.0.40
codegen_flags: <defaults>
</compile_context>

<pallas_src>
import jax
import jax.numpy as jnp
from jax.experimental import pallas as pl
from jax.experimental.pallas import tpu as pltpu

# "configuration['kiperwasser']" constants (synthetic, small):
RNN_UNIT = 16            # rnnUnitNum
H2       = 2 * RNN_UNIT  # bidirectional hidden size per position (32)
FOCUS    = 8             # focusedElemNum
DENSE1   = 32            # dense1
NCLASS   = 4             # enableCategorization == False -> 4 classes
LANE     = 128           # lane-dense padded class dimension for the output store


def _classifier_kernel(idx_ref,            # (B_tile, FOCUS)      int32  VMEM
                       sent_ref,           # (seq, H2)            f32    VMEM (resident)
                       w1_ref, b1_ref,     # (FOCUS*H2, DENSE1), (1, DENSE1)   (resident)
                       w2_ref, b2_ref,     # (DENSE1, LANE),     (1, LANE)     (resident, zero-padded)
                       out_ref):           # (B_tile, LANE)
    bt = idx_ref.shape[0]
    seq = sent_ref.shape[0]
    sent = sent_ref[...]                                           # (seq, H2)

    # selectRows + linear1, fused: one-hot selection matmuls on the MXU.
    # idx == -1 (or any out-of-range idx) matches no column -> zero row for free.
    pos = jax.lax.broadcasted_iota(jnp.int32, (bt, seq), 1)        # (B_tile, seq)
    acc = jnp.zeros((bt, DENSE1), dtype=jnp.float32)
    for f in range(FOCUS):                                         # FOCUS small & static -> unrolled
        sel = (pos == idx_ref[:, f:f + 1]).astype(jnp.float32)     # (B_tile, seq) one-hot
        rows_f = jnp.dot(sel, sent, preferred_element_type=jnp.float32)       # (B_tile, H2)
        acc = acc + jnp.dot(rows_f, w1_ref[pl.ds(f * H2, H2), :],
                            preferred_element_type=jnp.float32)               # (B_tile, DENSE1)

    # bias add (hoisted, single broadcast) + relu   (denseActivation == 'relu')
    h = jnp.maximum(acc + b1_ref[...], 0.0)

    # linear2 into the lane-dense padded class dimension.
    logits = jnp.dot(h, w2_ref[...], preferred_element_type=jnp.float32) + b2_ref[...]

    # log_softmax over the real NCLASS lanes only (padded lanes are ignored and
    # sliced off in the wrapper).
    lane = jax.lax.broadcasted_iota(jnp.int32, logits.shape, 1)
    valid = lane < NCLASS
    m = jnp.max(jnp.where(valid, logits, -jnp.inf), axis=1, keepdims=True)
    shifted = logits - m
    sumexp = jnp.sum(jnp.where(valid, jnp.exp(shifted), 0.0), axis=1, keepdims=True)
    out_ref[...] = shifted - jnp.log(sumexp)


def transition_classifier_forward(sent_embs, active_idxs, w1, b1, w2, b2, *, b_tile=128):
    """Batched forward: active_idxs is (B, FOCUS) int32, -1 = padding. Returns (B, NCLASS)."""
    seq, h2 = sent_embs.shape
    B = active_idxs.shape[0]

    # Pad the batch up to a multiple of the tile with -1 rows (zero selections).
    b_pad = pl.cdiv(B, b_tile) * b_tile
    if b_pad != B:
        active_idxs = jnp.pad(active_idxs, ((0, b_pad - B), (0, 0)), constant_values=-1)

    # Lane-dense second layer: zero-pad W2/b2 to 128 output lanes.
    w2p = jnp.zeros((DENSE1, LANE), jnp.float32).at[:, :NCLASS].set(w2)
    b2p = jnp.zeros((1, LANE), jnp.float32).at[:, :NCLASS].set(b2)

    out = pl.pallas_call(
        _classifier_kernel,
        out_shape=jax.ShapeDtypeStruct((b_pad, LANE), jnp.float32),
        grid_spec=pltpu.PrefetchScalarGridSpec(
            num_scalar_prefetch=0,
            grid=(b_pad // b_tile,),
            in_specs=[
                pl.BlockSpec((b_tile, FOCUS),      lambda b: (b, 0)),   # streams per tile
                pl.BlockSpec((seq, h2),            lambda b: (0, 0)),   # resident across grid
                pl.BlockSpec((FOCUS * H2, DENSE1), lambda b: (0, 0)),   # resident
                pl.BlockSpec((1, DENSE1),          lambda b: (0, 0)),   # resident
                pl.BlockSpec((DENSE1, LANE),       lambda b: (0, 0)),   # resident
                pl.BlockSpec((1, LANE),            lambda b: (0, 0)),   # resident
            ],
            out_specs=pl.BlockSpec((b_tile, LANE), lambda b: (b, 0)),
        ),
        compiler_params=pltpu.CompilerParams(
            dimension_semantics=("parallel",)),   # shard batch tiles across TCs on v7x
    )(active_idxs, sent_embs, w1, b1, w2p, b2p)

    return out[:B, :NCLASS]


if __name__ == "__main__":
    key = jax.random.PRNGKey(0)
    k1, k2, k3, k4, k5, k6 = jax.random.split(key, 6)

    SEQ = 24      # sentence length (incl. not_existing_node + ROOT)
    B = 200       # batch of transitions (deliberately not a multiple of the tile)
    B_TILE = 64   # batch tile (multiple of 8)

    # Deterministic synthetic inputs / parameters.
    sent_embs = jax.random.normal(k1, (SEQ, H2), dtype=jnp.float32)
    w1 = jax.random.normal(k2, (FOCUS * H2, DENSE1), dtype=jnp.float32) * 0.1
    b1 = jax.random.normal(k3, (1, DENSE1), dtype=jnp.float32) * 0.1
    w2 = jax.random.normal(k4, (DENSE1, NCLASS), dtype=jnp.float32) * 0.1
    b2 = jax.random.normal(k5, (1, NCLASS), dtype=jnp.float32) * 0.1

    # Focused-element index matrix as produced by getFocusedElems (-1 = padding).
    active_idxs = jax.random.randint(k6, (B, FOCUS), -1, SEQ, dtype=jnp.int32)

    scores = transition_classifier_forward(sent_embs, active_idxs, w1, b1, w2, b2,
                                           b_tile=B_TILE)
    scores = jax.block_until_ready(scores)

    # Pure-JAX reference (selectRows + linear1/relu + linear2 + log_softmax), batched.
    rows = jnp.where((active_idxs >= 0)[..., None],
                     sent_embs[jnp.maximum(active_idxs, 0)], 0.0)      # (B, FOCUS, H2)
    active = rows.reshape(B, FOCUS * H2)
    h = jnp.maximum(active @ w1 + b1, 0.0)
    logits = h @ w2 + b2
    ref = jax.nn.log_softmax(logits, axis=1)

    assert scores.shape == (B, NCLASS)
    assert jnp.allclose(scores, ref, atol=1e-4, rtol=1e-5), (scores, ref)

    print("KERNEL_OK")
</pallas_src>

<mosaic_0001>
module attributes {stable_mosaic.version = 11 : i64} {
  func.func @_classifier_kernel(%arg0: i32, %arg1: memref<64x8xi32, #tpu.memory_space<vmem>>, %arg2: memref<24x32xf32, #tpu.memory_space<vmem>>, %arg3: memref<256x32xf32, #tpu.memory_space<vmem>>, %arg4: memref<1x32xf32, #tpu.memory_space<vmem>>, %arg5: memref<32x128xf32, #tpu.memory_space<vmem>>, %arg6: memref<1x128xf32, #tpu.memory_space<vmem>>, %arg7: memref<64x128xf32, #tpu.memory_space<vmem>>) attributes {dimension_semantics = [#tpu.dimension_semantics<parallel>], iteration_bounds = array<i64: 4>, scalar_prefetch = 0 : i64, scratch_operands = 0 : i64, tpu.core_type = #tpu.core_type<tc>, window_params = [{transform_indices = @transform_0, window_bounds = array<i64: 64, 8>}, {pipeline_mode = #tpu.pipeline_mode<synchronous>, transform_indices = @transform_1, window_bounds = array<i64: 24, 32>}, {pipeline_mode = #tpu.pipeline_mode<synchronous>, transform_indices = @transform_2, window_bounds = array<i64: 256, 32>}, {pipeline_mode = #tpu.pipeline_mode<synchronous>, transform_indices = @transform_3, window_bounds = array<i64: 1, 32>}, {pipeline_mode = #tpu.pipeline_mode<synchronous>, transform_indices = @transform_4, window_bounds = array<i64: 32, 128>}, {pipeline_mode = #tpu.pipeline_mode<synchronous>, transform_indices = @transform_5, window_bounds = array<i64: 1, 128>}, {transform_indices = @transform_6, window_bounds = array<i64: 64, 128>}]} {
    %c0 = arith.constant 0 : index
    %c0_0 = arith.constant 0 : index
    %0 = vector.load %arg2[%c0, %c0_0] : memref<24x32xf32, #tpu.memory_space<vmem>>, vector<24x32xf32>
    %1 = tpu.iota {dimensions = array<i32: 1>} : vector<64x24xi32>
    %cst = arith.constant 0.000000e+00 : f32
    %2 = vector.broadcast %cst : f32 to vector<64x32xf32>
    %c0_1 = arith.constant 0 : index
    %c0_2 = arith.constant 0 : index
    %3 = vector.load %arg1[%c0_1, %c0_2] : memref<64x8xi32, #tpu.memory_space<vmem>>, vector<64x1xi32>
    %4 = vector.broadcast %3 : vector<64x1xi32> to vector<64x24xi32>
    %5 = arith.cmpi eq, %1, %4 : vector<64x24xi32>
    %6 = arith.extui %5 : vector<64x24xi1> to vector<64x24xi32>
    %7 = arith.sitofp %6 : vector<64x24xi32> to vector<64x24xf32>
    %cst_3 = arith.constant dense<0.000000e+00> : vector<64x32xf32>
    %8 = tpu.matmul %7, %0, %cst_3 {dimension_numbers = #tpu.dot_dimension_numbers<[1], [0], [0], [1], [0, 0, 1, 1], [], []>} : vector<64x24xf32>, vector<24x32xf32>, vector<64x32xf32> -> vector<64x32xf32>
    %c0_4 = arith.constant 0 : index
    %c0_5 = arith.constant 0 : index
    %9 = vector.load %arg3[%c0_4, %c0_5] : memref<256x32xf32, #tpu.memory_space<vmem>>, vector<32x32xf32>
    %cst_6 = arith.constant dense<0.000000e+00> : vector<64x32xf32>
    %10 = tpu.matmul %8, %9, %cst_6 {dimension_numbers = #tpu.dot_dimension_numbers<[1], [0], [0], [1], [0, 0, 1, 1], [], []>} : vector<64x32xf32>, vector<32x32xf32>, vector<64x32xf32> -> vector<64x32xf32>
    %11 = arith.addf %2, %10 : vector<64x32xf32>
    %c0_7 = arith.constant 0 : index
    %c1 = arith.constant 1 : index
    %12 = vector.load %arg1[%c0_7, %c1] : memref<64x8xi32, #tpu.memory_space<vmem>>, vector<64x1xi32>
    %13 = vector.broadcast %12 : vector<64x1xi32> to vector<64x24xi32>
    %14 = arith.cmpi eq, %1, %13 : vector<64x24xi32>
    %15 = arith.extui %14 : vector<64x24xi1> to vector<64x24xi32>
    %16 = arith.sitofp %15 : vector<64x24xi32> to vector<64x24xf32>
    %cst_8 = arith.constant dense<0.000000e+00> : vector<64x32xf32>
    %17 = tpu.matmul %16, %0, %cst_8 {dimension_numbers = #tpu.dot_dimension_numbers<[1], [0], [0], [1], [0, 0, 1, 1], [], []>} : vector<64x24xf32>, vector<24x32xf32>, vector<64x32xf32> -> vector<64x32xf32>
    %c32 = arith.constant 32 : index
    %c0_9 = arith.constant 0 : index
    %18 = vector.load %arg3[%c32, %c0_9] : memref<256x32xf32, #tpu.memory_space<vmem>>, vector<32x32xf32>
    %cst_10 = arith.constant dense<0.000000e+00> : vector<64x32xf32>
    %19 = tpu.matmul %17, %18, %cst_10 {dimension_numbers = #tpu.dot_dimension_numbers<[1], [0], [0], [1], [0, 0, 1, 1], [], []>} : vector<64x32xf32>, vector<32x32xf32>, vector<64x32xf32> -> vector<64x32xf32>
    %20 = arith.addf %11, %19 : vector<64x32xf32>
    %c0_11 = arith.constant 0 : index
    %c2 = arith.constant 2 : index
    %21 = vector.load %arg1[%c0_11, %c2] : memref<64x8xi32, #tpu.memory_space<vmem>>, vector<64x1xi32>
    %22 = vector.broadcast %21 : vector<64x1xi32> to vector<64x24xi32>
    %23 = arith.cmpi eq, %1, %22 : vector<64x24xi32>
    %24 = arith.extui %23 : vector<64x24xi1> to vector<64x24xi32>
    %25 = arith.sitofp %24 : vector<64x24xi32> to vector<64x24xf32>
    %cst_12 = arith.constant dense<0.000000e+00> : vector<64x32xf32>
    %26 = tpu.matmul %25, %0, %cst_12 {dimension_numbers = #tpu.dot_dimension_numbers<[1], [0], [0], [1], [0, 0, 1, 1], [], []>} : vector<64x24xf32>, vector<24x32xf32>, vector<64x32xf32> -> vector<64x32xf32>
    %c64 = arith.constant 64 : index
    %c0_13 = arith.constant 0 : index
    %27 = vector.load %arg3[%c64, %c0_13] : memref<256x32xf32, #tpu.memory_space<vmem>>, vector<32x32xf32>
    %cst_14 = arith.constant dense<0.000000e+00> : vector<64x32xf32>
    %28 = tpu.matmul %26, %27, %cst_14 {dimension_numbers = #tpu.dot_dimension_numbers<[1], [0], [0], [1], [0, 0, 1, 1], [], []>} : vector<64x32xf32>, vector<32x32xf32>, vector<64x32xf32> -> vector<64x32xf32>
    %29 = arith.addf %20, %28 : vector<64x32xf32>
    %c0_15 = arith.constant 0 : index
    %c3 = arith.constant 3 : index
    %30 = vector.load %arg1[%c0_15, %c3] : memref<64x8xi32, #tpu.memory_space<vmem>>, vector<64x1xi32>
    %31 = vector.broadcast %30 : vector<64x1xi32> to vector<64x24xi32>
    %32 = arith.cmpi eq, %1, %31 : vector<64x24xi32>
    %33 = arith.extui %32 : vector<64x24xi1> to vector<64x24xi32>
    %34 = arith.sitofp %33 : vector<64x24xi32> to vector<64x24xf32>
    %cst_16 = arith.constant dense<0.000000e+00> : vector<64x32xf32>
    %35 = tpu.matmul %34, %0, %cst_16 {dimension_numbers = #tpu.dot_dimension_numbers<[1], [0], [0], [1], [0, 0, 1, 1], [], []>} : vector<64x24xf32>, vector<24x32xf32>, vector<64x32xf32> -> vector<64x32xf32>
    %c96 = arith.constant 96 : index
    %c0_17 = arith.constant 0 : index
    %36 = vector.load %arg3[%c96, %c0_17] : memref<256x32xf32, #tpu.memory_space<vmem>>, vector<32x32xf32>
    %cst_18 = arith.constant dense<0.000000e+00> : vector<64x32xf32>
    %37 = tpu.matmul %35, %36, %cst_18 {dimension_numbers = #tpu.dot_dimension_numbers<[1], [0], [0], [1], [0, 0, 1, 1], [], []>} : vector<64x32xf32>, vector<32x32xf32>, vector<64x32xf32> -> vector<64x32xf32>
    %38 = arith.addf %29, %37 : vector<64x32xf32>
    %c0_19 = arith.constant 0 : index
    %c4 = arith.constant 4 : index
    %39 = vector.load %arg1[%c0_19, %c4] : memref<64x8xi32, #tpu.memory_space<vmem>>, vector<64x1xi32>
    %40 = vector.broadcast %39 : vector<64x1xi32> to vector<64x24xi32>
    %41 = arith.cmpi eq, %1, %40 : vector<64x24xi32>
    %42 = arith.extui %41 : vector<64x24xi1> to vector<64x24xi32>
    %43 = arith.sitofp %42 : vector<64x24xi32> to vector<64x24xf32>
    %cst_20 = arith.constant dense<0.000000e+00> : vector<64x32xf32>
    %44 = tpu.matmul %43, %0, %cst_20 {dimension_numbers = #tpu.dot_dimension_numbers<[1], [0], [0], [1], [0, 0, 1, 1], [], []>} : vector<64x24xf32>, vector<24x32xf32>, vector<64x32xf32> -> vector<64x32xf32>
    %c128 = arith.constant 128 : index
    %c0_21 = arith.constant 0 : index
    %45 = vector.load %arg3[%c128, %c0_21] : memref<256x32xf32, #tpu.memory_space<vmem>>, vector<32x32xf32>
    %cst_22 = arith.constant dense<0.000000e+00> : vector<64x32xf32>
    %46 = tpu.matmul %44, %45, %cst_22 {dimension_numbers = #tpu.dot_dimension_numbers<[1], [0], [0], [1], [0, 0, 1, 1], [], []>} : vector<64x32xf32>, vector<32x32xf32>, vector<64x32xf32> -> vector<64x32xf32>
    %47 = arith.addf %38, %46 : vector<64x32xf32>
    %c0_23 = arith.constant 0 : index
    %c5 = arith.constant 5 : index
    %48 = vector.load %arg1[%c0_23, %c5] : memref<64x8xi32, #tpu.memory_space<vmem>>, vector<64x1xi32>
    %49 = vector.broadcast %48 : vector<64x1xi32> to vector<64x24xi32>
    %50 = arith.cmpi eq, %1, %49 : vector<64x24xi32>
    %51 = arith.extui %50 : vector<64x24xi1> to vector<64x24xi32>
    %52 = arith.sitofp %51 : vector<64x24xi32> to vector<64x24xf32>
    %cst_24 = arith.constant dense<0.000000e+00> : vector<64x32xf32>
    %53 = tpu.matmul %52, %0, %cst_24 {dimension_numbers = #tpu.dot_dimension_numbers<[1], [0], [0], [1], [0, 0, 1, 1], [], []>} : vector<64x24xf32>, vector<24x32xf32>, vector<64x32xf32> -> vector<64x32xf32>
    %c160 = arith.constant 160 : index
    %c0_25 = arith.constant 0 : index
    %54 = vector.load %arg3[%c160, %c0_25] : memref<256x32xf32, #tpu.memory_space<vmem>>, vector<32x32xf32>
    %cst_26 = arith.constant dense<0.000000e+00> : vector<64x32xf32>
    %55 = tpu.matmul %53, %54, %cst_26 {dimension_numbers = #tpu.dot_dimension_numbers<[1], [0], [0], [1], [0, 0, 1, 1], [], []>} : vector<64x32xf32>, vector<32x32xf32>, vector<64x32xf32> -> vector<64x32xf32>
    %56 = arith.addf %47, %55 : vector<64x32xf32>
    %c0_27 = arith.constant 0 : index
    %c6 = arith.constant 6 : index
    %57 = vector.load %arg1[%c0_27, %c6] : memref<64x8xi32, #tpu.memory_space<vmem>>, vector<64x1xi32>
    %58 = vector.broadcast %57 : vector<64x1xi32> to vector<64x24xi32>
    %59 = arith.cmpi eq, %1, %58 : vector<64x24xi32>
    %60 = arith.extui %59 : vector<64x24xi1> to vector<64x24xi32>
    %61 = arith.sitofp %60 : vector<64x24xi32> to vector<64x24xf32>
    %cst_28 = arith.constant dense<0.000000e+00> : vector<64x32xf32>
    %62 = tpu.matmul %61, %0, %cst_28 {dimension_numbers = #tpu.dot_dimension_numbers<[1], [0], [0], [1], [0, 0, 1, 1], [], []>} : vector<64x24xf32>, vector<24x32xf32>, vector<64x32xf32> -> vector<64x32xf32>
    %c192 = arith.constant 192 : index
    %c0_29 = arith.constant 0 : index
    %63 = vector.load %arg3[%c192, %c0_29] : memref<256x32xf32, #tpu.memory_space<vmem>>, vector<32x32xf32>
    %cst_30 = arith.constant dense<0.000000e+00> : vector<64x32xf32>
    %64 = tpu.matmul %62, %63, %cst_30 {dimension_numbers = #tpu.dot_dimension_numbers<[1], [0], [0], [1], [0, 0, 1, 1], [], []>} : vector<64x32xf32>, vector<32x32xf32>, vector<64x32xf32> -> vector<64x32xf32>
    %65 = arith.addf %56, %64 : vector<64x32xf32>
    %c0_31 = arith.constant 0 : index
    %c7 = arith.constant 7 : index
    %66 = vector.load %arg1[%c0_31, %c7] : memref<64x8xi32, #tpu.memory_space<vmem>>, vector<64x1xi32>
    %67 = vector.broadcast %66 : vector<64x1xi32> to vector<64x24xi32>
    %68 = arith.cmpi eq, %1, %67 : vector<64x24xi32>
    %69 = arith.extui %68 : vector<64x24xi1> to vector<64x24xi32>
    %70 = arith.sitofp %69 : vector<64x24xi32> to vector<64x24xf32>
    %cst_32 = arith.constant dense<0.000000e+00> : vector<64x32xf32>
    %71 = tpu.matmul %70, %0, %cst_32 {dimension_numbers = #tpu.dot_dimension_numbers<[1], [0], [0], [1], [0, 0, 1, 1], [], []>} : vector<64x24xf32>, vector<24x32xf32>, vector<64x32xf32> -> vector<64x32xf32>
    %c224 = arith.constant 224 : index
    %c0_33 = arith.constant 0 : index
    %72 = vector.load %arg3[%c224, %c0_33] : memref<256x32xf32, #tpu.memory_space<vmem>>, vector<32x32xf32>
    %cst_34 = arith.constant dense<0.000000e+00> : vector<64x32xf32>
    %73 = tpu.matmul %71, %72, %cst_34 {dimension_numbers = #tpu.dot_dimension_numbers<[1], [0], [0], [1], [0, 0, 1, 1], [], []>} : vector<64x32xf32>, vector<32x32xf32>, vector<64x32xf32> -> vector<64x32xf32>
    %74 = arith.addf %65, %73 : vector<64x32xf32>
    %c0_35 = arith.constant 0 : index
    %c0_36 = arith.constant 0 : index
    %75 = vector.load %arg4[%c0_35, %c0_36] : memref<1x32xf32, #tpu.memory_space<vmem>>, vector<1x32xf32>
    %76 = vector.broadcast %75 : vector<1x32xf32> to vector<64x32xf32>
    %77 = arith.addf %74, %76 : vector<64x32xf32>
    %cst_37 = arith.constant 0.000000e+00 : f32
    %78 = vector.broadcast %cst_37 : f32 to vector<64x32xf32>
    %79 = arith.maximumf %77, %78 : vector<64x32xf32>
    %c0_38 = arith.constant 0 : index
    %c0_39 = arith.constant 0 : index
    %80 = vector.load %arg5[%c0_38, %c0_39] : memref<32x128xf32, #tpu.memory_space<vmem>>, vector<32x128xf32>
    %cst_40 = arith.constant dense<0.000000e+00> : vector<64x128xf32>
    %81 = tpu.matmul %79, %80, %cst_40 {dimension_numbers = #tpu.dot_dimension_numbers<[1], [0], [0], [1], [0, 0, 1, 1], [], []>} : vector<64x32xf32>, vector<32x128xf32>, vector<64x128xf32> -> vector<64x128xf32>
    %c0_41 = arith.constant 0 : index
    %c0_42 = arith.constant 0 : index
    %82 = vector.load %arg6[%c0_41, %c0_42] : memref<1x128xf32, #tpu.memory_space<vmem>>, vector<1x128xf32>
    %83 = vector.broadcast %82 : vector<1x128xf32> to vector<64x128xf32>
    %84 = arith.addf %81, %83 : vector<64x128xf32>
    %85 = tpu.iota {dimensions = array<i32: 1>} : vector<64x128xi32>
    %c4_i32 = arith.constant 4 : i32
    %86 = vector.broadcast %c4_i32 : i32 to vector<64x128xi32>
    %87 = arith.cmpi slt, %85, %86 : vector<64x128xi32>
    %cst_43 = arith.constant 0xFF800000 : f32
    %88 = vector.broadcast %cst_43 : f32 to vector<64x128xf32>
    %89 = arith.select %87, %84, %88 : vector<64x128xi1>, vector<64x128xf32>
    %cst_44 = arith.constant dense<0xFF800000> : vector<64xf32>
    %90 = vector.multi_reduction <maximumf>, %89, %cst_44 [1] : vector<64x128xf32> to vector<64xf32>
    %91 = vector.shape_cast %90 : vector<64xf32> to vector<64x1xf32>
    %92 = vector.broadcast %91 : vector<64x1xf32> to vector<64x128xf32>
    %93 = arith.subf %84, %92 : vector<64x128xf32>
    %94 = math.exp %93 : vector<64x128xf32>
    %cst_45 = arith.constant 0.000000e+00 : f32
    %95 = vector.broadcast %cst_45 : f32 to vector<64x128xf32>
    %96 = arith.select %87, %94, %95 : vector<64x128xi1>, vector<64x128xf32>
    %cst_46 = arith.constant dense<0.000000e+00> : vector<64xf32>
    %97 = vector.multi_reduction <add>, %96, %cst_46 [1] : vector<64x128xf32> to vector<64xf32>
    %98 = vector.shape_cast %97 : vector<64xf32> to vector<64x1xf32>
    %99 = math.log %98 : vector<64x1xf32>
    %100 = vector.broadcast %99 : vector<64x1xf32> to vector<64x128xf32>
    %101 = arith.subf %93, %100 : vector<64x128xf32>
    %c0_47 = arith.constant 0 : index
    %c0_48 = arith.constant 0 : index
    %102 = vector.load %arg7[%c0_47, %c0_48] : memref<64x128xf32, #tpu.memory_space<vmem>>, vector<64x128xf32>
    tpu.vector_store %arg7[%c0_47, %c0_48], %101 {strides = array<i32>} : memref<64x128xf32, #tpu.memory_space<vmem>>, vector<64x128xf32>,
    return
  }
  func.func @transform_0(%arg0: i32) -> (i32, i32) {
    %c0_i32 = arith.constant 0 : i32
    %c0_i32_0 = arith.constant 0 : i32
    return %arg0, %c0_i32 : i32, i32
  }
  func.func @transform_1(%arg0: i32) -> (i32, i32) {
    %c0_i32 = arith.constant 0 : i32
    %c0_i32_0 = arith.constant 0 : i32
    %c0_i32_1 = arith.constant 0 : i32
    return %c0_i32, %c0_i32_0 : i32, i32
  }
  func.func @transform_2(%arg0: i32) -> (i32, i32) {
    %c0_i32 = arith.constant 0 : i32
    %c0_i32_0 = arith.constant 0 : i32
    %c0_i32_1 = arith.constant 0 : i32
    return %c0_i32, %c0_i32_0 : i32, i32
  }
  func.func @transform_3(%arg0: i32) -> (i32, i32) {
    %c0_i32 = arith.constant 0 : i32
    %c0_i32_0 = arith.constant 0 : i32
    %c0_i32_1 = arith.constant 0 : i32
    return %c0_i32, %c0_i32_0 : i32, i32
  }
  func.func @transform_4(%arg0: i32) -> (i32, i32) {
    %c0_i32 = arith.constant 0 : i32
    %c0_i32_0 = arith.constant 0 : i32
    %c0_i32_1 = arith.constant 0 : i32
    return %c0_i32, %c0_i32_0 : i32, i32
  }
  func.func @transform_5(%arg0: i32) -> (i32, i32) {
    %c0_i32 = arith.constant 0 : i32
    %c0_i32_0 = arith.constant 0 : i32
    %c0_i32_1 = arith.constant 0 : i32
    return %c0_i32, %c0_i32_0 : i32, i32
  }
  func.func @transform_6(%arg0: i32) -> (i32, i32) {
    %c0_i32 = arith.constant 0 : i32
    %c0_i32_0 = arith.constant 0 : i32
    return %arg0, %c0_i32 : i32, i32
  }
}

</mosaic_0001>

<llo_original>
// kernel: tpu_custom_call.1
$region0: #{tpu_custom_call.1}
  #allocation0 [shape = 'u32[]', space=smem, size = 0x4, offset = 0x4, fixed_abs, tag = 'smem constant byte address 0x4 - core index']
  #allocation1 [shape = 'u32[72,128]{1,0:T(1,128)}', space=vmem, size = 0x9000, scoped, tag = 'internal scratch']
  %s0 = inlined_call_operand.vmem [shape: s32[256,8], index: 0, kind: input, shape index: {}]
  %s1 = inlined_call_operand.vmem [shape: f32[24,32], index: 1, kind: input, shape index: {}]
  %s2 = inlined_call_operand.vmem [shape: f32[256,32], index: 2, kind: input, shape index: {}]
  %s3 = inlined_call_operand.vmem [shape: f32[1,32], index: 3, kind: input, shape index: {}]
  %s4 = inlined_call_operand.vmem [shape: f32[32,128], index: 4, kind: input, shape index: {}]
  %s5 = inlined_call_operand.vmem [shape: f32[1,128], index: 5, kind: input, shape index: {}]
  %s6 = inlined_call_operand.hbm [shape: f32[256,128], index: 6, kind: output, shape index: {}]
  %s7 = sld [smem:[#allocation0]]
  $region57: #{tpu_custom_call.1} parent=0
    _
  %s9 = ssub.s32 1, %s7
  %s10 = scalar_select 0, %s9, %s7
  $region1: #{tpu_custom_call.1} parent=0
    #allocation2 [shape = 'u8[65536]{0}', space=vmem, size = 0x10000, scoped, tag = 'output window, operand 0']
    #allocation3 [shape = 's32[2]{0}', space=sflag, size = 0x8, scoped, tag = 'scoped memory for tpu_custom_call.1']
    %11 = vsyncpa [#allocation3], 0
    %s12 = scalar_lea.sflag [#allocation3], 1
    %13 = vsyncpa %s12, 0
    loop: start=0, step=1, limit=6
    $region2: #{tpu_custom_call.1} parent=1 // loop_pre_header
      _
    $region3: #{tpu_custom_call.1} parent=1 // loop_header
      %s15 = sphi 0, %s19
      %p16 = scmp.ge.s32.totalorder %s15, 6
      %s25 = sphi 0, %s27
      %s28 = sphi 0, %s25
      %s29 = sphi 0, %s28
      %s45 = sphi 0, %s29
      %s49 = sphi 0, %s49
      %s51 = sphi 0, %s49
      %s52 = sphi 0, %s51
      %s66 = sphi 0, %s52
      %s70 = sphi 0, %s70
      %s72 = sphi 0, %s70
      %s73 = sphi 0, %s72
      %s87 = sphi 0, %s73
      %s91 = sphi 0, %s91
      %s93 = sphi 0, %s91
      %s94 = sphi 0, %s93
      %s108 = sphi 0, %s94
      %s112 = sphi 0, %s112
      %s114 = sphi 0, %s112
      %s115 = sphi 0, %s114
      %s129 = sphi 0, %s115
      %s133 = sphi 0, %s133
      %s135 = sphi 0, %s133
      %s136 = sphi 0, %s135
      %s150 = sphi 0, %s136
      %s156 = sphi 0, %s158
      %s159 = sphi 0, %s156
      %s160 = sphi 0, %s159
      %s176 = sphi 0, %s160
    $region4: #{tpu_custom_call.1} parent=1 // loop_header_branch
      %18 = sbr.rel (%p16) target = $region8
    $region5: #{tpu_custom_call.1} parent=1 // loop_body
      %s20 = ssub.s32 %s15, 1
      %s21 = ssub.s32 %s15, 2
      %s22 = sadd.s32 %s15, 1
      %s23 = ssub.s32 %s15, %s22
      %p24 = scmp.eq.s32.totalorder %s23, 0
      %s26 = sadd.s32 %s25, 1
      %s27 = scalar_select %p24, %s25, %s26
      %p30 = pneg %p24
      %p31 = scmp.eq.s32.totalorder %s15, 3
      %p32 = por %p30, %p31
      %p33 = scmp.ne.s32.totalorder %s25, %s28
      %p34 = scmp.eq.s32.totalorder %s15, 0
      %p35 = por %p33, %p34
      %p36 = scmp.ne.s32.totalorder %s25, %s28
      %p37 = scmp.eq.s32.totalorder %s20, 3
      %p38 = por %p36, %p37
      %p39 = scmp.ne.s32.totalorder %s28, %s29
      %p40 = scmp.eq.s32.totalorder %s20, 0
      %p41 = por %p39, %p40
      %p42 = scmp.ne.s32.totalorder %s28, %s29
      %p43 = scmp.eq.s32.totalorder %s21, 3
      %p44 = por %p42, %p43
      %p46 = scmp.ne.s32.totalorder %s29, %s45
      %p47 = scmp.eq.s32.totalorder %s21, 0
      %p48 = por %p46, %p47
      %s50 = sadd.s32 %s49, 1
      %p53 = scmp.eq.s32.totalorder %s15, 3
      %p54 = scmp.ne.s32.totalorder %s49, %s51
      %p55 = scmp.eq.s32.totalorder %s15, 0
      %p56 = por %p54, %p55
      %p57 = scmp.ne.s32.totalorder %s49, %s51
      %p58 = scmp.eq.s32.totalorder %s20, 3
      %p59 = por %p57, %p58
      %p60 = scmp.ne.s32.totalorder %s51, %s52
      %p61 = scmp.eq.s32.totalorder %s20, 0
      %p62 = por %p60, %p61
      %p63 = scmp.ne.s32.totalorder %s51, %s52
      %p64 = scmp.eq.s32.totalorder %s21, 3
      %p65 = por %p63, %p64
      %p67 = scmp.ne.s32.totalorder %s52, %s66
      %p68 = scmp.eq.s32.totalorder %s21, 0
      %p69 = por %p67, %p68
      %s71 = sadd.s32 %s70, 1
      %p74 = scmp.eq.s32.totalorder %s15, 3
      %p75 = scmp.ne.s32.totalorder %s70, %s72
      %p76 = scmp.eq.s32.totalorder %s15, 0
      %p77 = por %p75, %p76
      %p78 = scmp.ne.s32.totalorder %s70, %s72
      %p79 = scmp.eq.s32.totalorder %s20, 3
      %p80 = por %p78, %p79
      %p81 = scmp.ne.s32.totalorder %s72, %s73
      %p82 = scmp.eq.s32.totalorder %s20, 0
      %p83 = por %p81, %p82
      %p84 = scmp.ne.s32.totalorder %s72, %s73
      %p85 = scmp.eq.s32.totalorder %s21, 3
      %p86 = por %p84, %p85
      %p88 = scmp.ne.s32.totalorder %s73, %s87
      %p89 = scmp.eq.s32.totalorder %s21, 0
      %p90 = por %p88, %p89
      %s92 = sadd.s32 %s91, 1
      %p95 = scmp.eq.s32.totalorder %s15, 3
      %p96 = scmp.ne.s32.totalorder %s91, %s93
      %p97 = scmp.eq.s32.totalorder %s15, 0
      %p98 = por %p96, %p97
      %p99 = scmp.ne.s32.totalorder %s91, %s93
      %p100 = scmp.eq.s32.totalorder %s20, 3
      %p101 = por %p99, %p100
      %p102 = scmp.ne.s32.totalorder %s93, %s94
      %p103 = scmp.eq.s32.totalorder %s20, 0
      %p104 = por %p102, %p103
      %p105 = scmp.ne.s32.totalorder %s93, %s94
      %p106 = scmp.eq.s32.totalorder %s21, 3
      %p107 = por %p105, %p106
      %p109 = scmp.ne.s32.totalorder %s94, %s108
      %p110 = scmp.eq.s32.totalorder %s21, 0
      %p111 = por %p109, %p110
      %s113 = sadd.s32 %s112, 1
      %p116 = scmp.eq.s32.totalorder %s15, 3
      %p117 = scmp.ne.s32.totalorder %s112, %s114
      %p118 = scmp.eq.s32.totalorder %s15, 0
      %p119 = por %p117, %p118
      %p120 = scmp.ne.s32.totalorder %s112, %s114
      %p121 = scmp.eq.s32.totalorder %s20, 3
      %p122 = por %p120, %p121
      %p123 = scmp.ne.s32.totalorder %s114, %s115
      %p124 = scmp.eq.s32.totalorder %s20, 0
      %p125 = por %p123, %p124
      %p126 = scmp.ne.s32.totalorder %s114, %s115
      %p127 = scmp.eq.s32.totalorder %s21, 3
      %p128 = por %p126, %p127
      %p130 = scmp.ne.s32.totalorder %s115, %s129
      %p131 = scmp.eq.s32.totalorder %s21, 0
      %p132 = por %p130, %p131
      %s134 = sadd.s32 %s133, 1
      %p137 = scmp.eq.s32.totalorder %s15, 3
      %p138 = scmp.ne.s32.totalorder %s133, %s135
      %p139 = scmp.eq.s32.totalorder %s15, 0
      %p140 = por %p138, %p139
      %p141 = scmp.ne.s32.totalorder %s133, %s135
      %p142 = scmp.eq.s32.totalorder %s20, 3
      %p143 = por %p141, %p142
      %p144 = scmp.ne.s32.totalorder %s135, %s136
      %p145 = scmp.eq.s32.totalorder %s20, 0
      %p146 = por %p144, %p145
      %p147 = scmp.ne.s32.totalorder %s135, %s136
      %p148 = scmp.eq.s32.totalorder %s21, 3
      %p149 = por %p147, %p148
      %p151 = scmp.ne.s32.totalorder %s136, %s150
      %p152 = scmp.eq.s32.totalorder %s21, 0
      %p153 = por %p151, %p152
      %s154 = ssub.s32 %s15, %s22
      %p155 = scmp.eq.s32.totalorder %s154, 0
      %s157 = sadd.s32 %s156, 1
      %s158 = scalar_select %p155, %s156, %s157
      %p161 = pneg %p155
      %p162 = scmp.eq.s32.totalorder %s15, 3
      %p163 = por %p161, %p162
      %p164 = scmp.ne.s32.totalorder %s156, %s159
      %p165 = scmp.eq.s32.totalorder %s15, 0
      %p166 = por %p164, %p165
      %p167 = scmp.ne.s32.totalorder %s156, %s159
      %p168 = scmp.eq.s32.totalorder %s20, 3
      %p169 = por %p167, %p168
      %p170 = scmp.ne.s32.totalorder %s159, %s160
      %p171 = scmp.eq.s32.totalorder %s20, 0
      %p172 = por %p170, %p171
      %p173 = scmp.ne.s32.totalorder %s159, %s160
      %p174 = scmp.eq.s32.totalorder %s21, 3
      %p175 = por %p173, %p174
      %p177 = scmp.ne.s32.totalorder %s160, %s176
      %p178 = scmp.eq.s32.totalorder %s21, 0
      %p179 = por %p177, %p178
      %p180 = scmp.le.s32.totalorder 1, %s15
      %p181 = scmp.lt.s32.totalorder %s15, 5
      %p182 = pnand %p180, %p181
      %p183 = pneg %p182
      // Predicated region
      $region9: #{tpu_custom_call.1} parent=5 // pred_check
        _
      $region10: #{tpu_custom_call.1} parent=5 // pred_check_branch
        %185 = sbr.rel (%p182) target = $region12
      $region11: #{tpu_custom_call.1} parent=5 // pred_region
        %s186 = ssub.s32 %s15, 1
        // Predicated region
        $region13: #{tpu_custom_call.1} parent=11 // pred_check
          %p187 = pneg %p62
        $region14: #{tpu_custom_call.1} parent=11 // pred_check_branch
          %189 = sbr.rel (%p187) target = $region16
        $region15: #{tpu_custom_call.1} parent=11 // pred_region
          _
        $region16: #{tpu_custom_call.1} parent=11 // pred_fallthru
          _
        // Predicated region
        $region17: #{tpu_custom_call.1} parent=11 // pred_check
          %p190 = pneg %p83
        $region18: #{tpu_custom_call.1} parent=11 // pred_check_branch
          %192 = sbr.rel (%p190) target = $region20
        $region19: #{tpu_custom_call.1} parent=11 // pred_region
          _
        $region20: #{tpu_custom_call.1} parent=11 // pred_fallthru
          _
        // Predicated region
        $region21: #{tpu_custom_call.1} parent=11 // pred_check
          %p193 = pneg %p104
        $region22: #{tpu_custom_call.1} parent=11 // pred_check_branch
          %195 = sbr.rel (%p193) target = $region24
        $region23: #{tpu_custom_call.1} parent=11 // pred_region
          _
        $region24: #{tpu_custom_call.1} parent=11 // pred_fallthru
          _
        // Predicated region
        $region25: #{tpu_custom_call.1} parent=11 // pred_check
          %p196 = pneg %p125
        $region26: #{tpu_custom_call.1} parent=11 // pred_check_branch
          %198 = sbr.rel (%p196) target = $region28
        $region27: #{tpu_custom_call.1} parent=11 // pred_region
          _
        $region28: #{tpu_custom_call.1} parent=11 // pred_fallthru
          _
        // Predicated region
        $region29: #{tpu_custom_call.1} parent=11 // pred_check
          %p199 = pneg %p146
        $region30: #{tpu_custom_call.1} parent=11 // pred_check_branch
          %201 = sbr.rel (%p199) target = $region32
        $region31: #{tpu_custom_call.1} parent=11 // pred_region
          _
        $region32: #{tpu_custom_call.1} parent=11 // pred_fallthru
          _
      $region12: #{tpu_custom_call.1} parent=5 // pred_fallthru
        _
      %p202 = scmp.lt.s32.totalorder %s15, 4
      // Predicated region
      $region33: #{tpu_custom_call.1} parent=5 // pred_check
        %p203 = pneg %p202
      $region34: #{tpu_custom_call.1} parent=5 // pred_check_branch
        %205 = sbr.rel (%p203) target = $region36
      $region35: #{tpu_custom_call.1} parent=5 // pred_region
        // Predicated region
        $region37: #{tpu_custom_call.1} parent=35 // pred_check
          %p206 = pneg %p35
        $region38: #{tpu_custom_call.1} parent=35 // pred_check_branch
          %208 = sbr.rel (%p206) target = $region40
        $region39: #{tpu_custom_call.1} parent=35 // pred_region
          %s209 = smul.u32 8, %s15
          %p210 = scmp.lt.s32.totalorder %s209, 31
          %s211 = scalar_select %p210, %s209, 31
          %s212 = smul.addr %s211, 8
          %s213 = scalar_lea.vmem %s0, %s212
          %s214 = smul.u32 8, %s15
        $region40: #{tpu_custom_call.1} parent=35 // pred_fallthru
          _
      $region36: #{tpu_custom_call.1} parent=5 // pred_fallthru
        _
      %p215 = scmp.le.s32.totalorder 1, %s15
      %p216 = scmp.lt.s32.totalorder %s15, 5
      %p217 = pnand %p215, %p216
      %p218 = pneg %p217
      // Predicated region
      $region41: #{tpu_custom_call.1} parent=5 // pred_check
        _
      $region42: #{tpu_custom_call.1} parent=5 // pred_check_branch
        %220 = sbr.rel (%p217) target = $region44
      $region43: #{tpu_custom_call.1} parent=5 // pred_region
        %s221 = ssub.s32 %s15, 1
        %s222 = smul.u32 8, %s20
        %p223 = scmp.lt.s32.totalorder %s222, 31
        %s224 = scalar_select %p223, %s222, 31
        %s225 = smul.addr %s224, 8
        %s226 = scalar_lea.vmem %s0, %s225
        %p227 = pneg %p41
        %p228 = pneg %p38
        %p229 = pneg %p62
        %p230 = pneg %p59
        %p231 = pneg %p83
        %p232 = pneg %p80
        %p233 = pneg %p104
        %p234 = pneg %p101
        %p235 = pneg %p125
        %p236 = pneg %p122
        %p237 = pneg %p146
        %p238 = pneg %p143
        %p239 = pneg %p172
        %p240 = pneg %p169
        %s241 = sand.u32 %s159, 1
        %s242 = scalar_lea.sflag [#allocation3], %s241
        %s243 = sand.u32 %s159, 1
        %s244 = smul.addr %s243, 64
        %s245 = scalar_lea.vmem [#allocation2], %s244
        %s246 = smul.u32 8, %s20
        %p247 = scmp.lt.s32.totalorder %s246, 31
        %s248 = scalar_select %p247, %s246, 31
        %s249 = smul.addr %s248, 8
        %s250 = scalar_lea.vmem %s0, %s249
        %s251 = smul.u32 8, %s20
        %s252 = smul.u32 8, %s20
        %v253 = vld [vmem:[%s1] sm:$0xff]
        %v254 = vld [vmem:[%s1 + $0x8] sm:$0xff]
        %v255 = vld [vmem:[%s1 + $0x10] sm:$0xff]
        %v256 = vlaneseq
        %v257 = vand.u32 %v256, 127
        %v258 = vld [vmem:[%s250] sm:$0xff]
        %v259 = vld [vmem:[%s250 + $0x8] sm:$0xff]
        %v260 = vld [vmem:[%s250 + $0x10] sm:$0xff]
        %v261 = vld [vmem:[%s250 + $0x18] sm:$0xff]
        %v262 = vld [vmem:[%s250 + $0x20] sm:$0xff]
        %v263 = vld [vmem:[%s250 + $0x28] sm:$0xff]
        %v264 = vld [vmem:[%s250 + $0x30] sm:$0xff]
        %v265 = vld [vmem:[%s250 + $0x38] sm:$0xff]
        %266 = vset.pattern.permute.xlu0 0
        %267 = vperm.xlu0 %266, %v258
        %v268 = vpop.permute.xlu0 %267
        %269 = vset.pattern.permute.xlu0 0
        %270 = vperm.xlu0 %269, %v259
        %v271 = vpop.permute.xlu0 %270
        %272 = vset.pattern.permute.xlu0 0
        %273 = vperm.xlu0 %272, %v260
        %v274 = vpop.permute.xlu0 %273
        %275 = vset.pattern.permute.xlu0 0
        %276 = vperm.xlu0 %275, %v261
        %v277 = vpop.permute.xlu0 %276
        %278 = vset.pattern.permute.xlu0 0
        %279 = vperm.xlu0 %278, %v262
        %v280 = vpop.permute.xlu0 %279
        %281 = vset.pattern.permute.xlu0 0
        %282 = vperm.xlu0 %281, %v263
        %v283 = vpop.permute.xlu0 %282
        %284 = vset.pattern.permute.xlu0 0
        %285 = vperm.xlu0 %284, %v264
        %v286 = vpop.permute.xlu0 %285
        %287 = vset.pattern.permute.xlu0 0
        %288 = vperm.xlu0 %287, %v265
        %v289 = vpop.permute.xlu0 %288
        %vm290 = vcmp.eq.s32.totalorder %v257, %v268
        %vm291 = vcmp.eq.s32.totalorder %v257, %v271
        %vm292 = vcmp.eq.s32.totalorder %v257, %v274
        %vm293 = vcmp.eq.s32.totalorder %v257, %v277
        %vm294 = vcmp.eq.s32.totalorder %v257, %v280
        %vm295 = vcmp.eq.s32.totalorder %v257, %v283
        %vm296 = vcmp.eq.s32.totalorder %v257, %v286
        %vm297 = vcmp.eq.s32.totalorder %v257, %v289
        %v298 = vsel %vm290, 1, 0
        %v299 = vsel %vm291, 1, 0
        %v300 = vsel %vm292, 1, 0
        %v301 = vsel %vm293, 1, 0
        %v302 = vsel %vm294, 1, 0
        %v303 = vsel %vm295, 1, 0
        %v304 = vsel %vm296, 1, 0
        %v305 = vsel %vm297, 1, 0
        %v306 = vcvt.s32.f32 %v298
        %v307 = vcvt.s32.f32 %v299
        %v308 = vcvt.s32.f32 %v300
        %v309 = vcvt.s32.f32 %v301
        %v310 = vcvt.s32.f32 %v302
        %v311 = vcvt.s32.f32 %v303
        %v312 = vcvt.s32.f32 %v304
        %v313 = vcvt.s32.f32 %v305
        %vm314 = vcmask 195584
        %v316 = vsel %vm314, %v306, 0
        %v319 = vsel %vm314, %v307, 0
        %v322 = vsel %vm314, %v308, 0
        %v325 = vsel %vm314, %v309, 0
        %v328 = vsel %vm314, %v310, 0
        %v331 = vsel %vm314, %v311, 0
        %v334 = vsel %vm314, %v312, 0
        %v337 = vsel %vm314, %v313, 0
        %339 = vmatpush.msra.mxu0 0.0
        %340 = vmatpush.msra.mxu0 0.0
        %341 = vmatpush.msra.mxu0 0.0
        %342 = vmatpush.msra.mxu0 0.0
        %343 = vmatpush.msra.mxu0 0.0
        %344 = vmatpush.msra.mxu0 0.0
        %345 = vmatpush.msra.mxu0 0.0
        %346 = vmatpush.msra.mxu0 0.0
        %347 = vmatpush.msra.mxu0 0.0
        %348 = vmatpush.msra.mxu0 0.0
        %349 = vmatpush.msra.mxu0 0.0
        %350 = vmatpush.msra.mxu0 0.0
        %351 = vmatpush.msra.mxu0 0.0
        %352 = vmatpush.msra.mxu0 %v255
        %353 = vmatpush.msra.mxu0 %v254
        %354 = vmatpush.msra.mxu0 %v253
        %355 = vmatmul.f32.gmra.mxu0 %v316
        %v356 = vpop.f32.mrf.mxu0
        %v357 = vadd.f32 0.0, %v356
        %358 = vmatmul.f32.gmra.mxu0 %v319
        %v359 = vpop.f32.mrf.mxu0
        %v360 = vadd.f32 0.0, %v359
        %361 = vmatmul.f32.gmra.mxu0 %v322
        %v362 = vpop.f32.mrf.mxu0
        %v363 = vadd.f32 0.0, %v362
        %364 = vmatmul.f32.gmra.mxu0 %v325
        %v365 = vpop.f32.mrf.mxu0
        %v366 = vadd.f32 0.0, %v365
        %367 = vmatmul.f32.gmra.mxu0 %v328
        %v368 = vpop.f32.mrf.mxu0
        %v369 = vadd.f32 0.0, %v368
        %370 = vmatmul.f32.gmra.mxu0 %v331
        %v371 = vpop.f32.mrf.mxu0
        %v372 = vadd.f32 0.0, %v371
        %373 = vmatmul.f32.gmra.mxu0 %v334
        %v374 = vpop.f32.mrf.mxu0
        %v375 = vadd.f32 0.0, %v374
        %376 = vmatmul.f32.gmra.mxu0 %v337
        %v377 = vpop.f32.mrf.mxu0
        %v378 = vadd.f32 0.0, %v377
        %379 = vdwg.mxu0
        %v380 = vld [vmem:[%s2] sm:$0xff]
        %v381 = vld [vmem:[%s2 + $0x8] sm:$0xff]
        %v382 = vld [vmem:[%s2 + $0x10] sm:$0xff]
        %v383 = vld [vmem:[%s2 + $0x18] sm:$0xff]
        %384 = vset.pattern.permute.xlu0 1
        %385 = vperm.xlu0 %384, %v258
        %v386 = vpop.permute.xlu0 %385
        %387 = vset.pattern.permute.xlu0 1
        %388 = vperm.xlu0 %387, %v259
        %v389 = vpop.permute.xlu0 %388
        %390 = vset.pattern.permute.xlu0 1
        %391 = vperm.xlu0 %390, %v260
        %v392 = vpop.permute.xlu0 %391
        %393 = vset.pattern.permute.xlu0 1
        %394 = vperm.xlu0 %393, %v261
        %v395 = vpop.permute.xlu0 %394
        %396 = vset.pattern.permute.xlu0 1
        %397 = vperm.xlu0 %396, %v262
        %v398 = vpop.permute.xlu0 %397
        %399 = vset.pattern.permute.xlu0 1
        %400 = vperm.xlu0 %399, %v263
        %v401 = vpop.permute.xlu0 %400
        %402 = vset.pattern.permute.xlu0 1
        %403 = vperm.xlu0 %402, %v264
        %v404 = vpop.permute.xlu0 %403
        %405 = vset.pattern.permute.xlu0 1
        %406 = vperm.xlu0 %405, %v265
        %v407 = vpop.permute.xlu0 %406
        %vm408 = vcmp.eq.s32.totalorder %v257, %v386
        %vm409 = vcmp.eq.s32.totalorder %v257, %v389
        %vm410 = vcmp.eq.s32.totalorder %v257, %v392
        %vm411 = vcmp.eq.s32.totalorder %v257, %v395
        %vm412 = vcmp.eq.s32.totalorder %v257, %v398
        %vm413 = vcmp.eq.s32.totalorder %v257, %v401
        %vm414 = vcmp.eq.s32.totalorder %v257, %v404
        %vm415 = vcmp.eq.s32.totalorder %v257, %v407
        %v416 = vsel %vm408, 1, 0
        %v417 = vsel %vm409, 1, 0
        %v418 = vsel %vm410, 1, 0
        %v419 = vsel %vm411, 1, 0
        %v420 = vsel %vm412, 1, 0
        %v421 = vsel %vm413, 1, 0
        %v422 = vsel %vm414, 1, 0
        %v423 = vsel %vm415, 1, 0
        %v424 = vcvt.s32.f32 %v416
        %v425 = vcvt.s32.f32 %v417
        %v426 = vcvt.s32.f32 %v418
        %v427 = vcvt.s32.f32 %v419
        %v428 = vcvt.s32.f32 %v420
        %v429 = vcvt.s32.f32 %v421
        %v430 = vcvt.s32.f32 %v422
        %v431 = vcvt.s32.f32 %v423
        %v433 = vsel %vm314, %v424, 0
        %v436 = vsel %vm314, %v425, 0
        %v439 = vsel %vm314, %v426, 0
        %v442 = vsel %vm314, %v427, 0
        %v445 = vsel %vm314, %v428, 0
        %v448 = vsel %vm314, %v429, 0
        %v451 = vsel %vm314, %v430, 0
        %v454 = vsel %vm314, %v431, 0
        %456 = vmatpush.msra.mxu0 0.0
        %457 = vmatpush.msra.mxu0 0.0
        %458 = vmatpush.msra.mxu0 0.0
        %459 = vmatpush.msra.mxu0 0.0
        %460 = vmatpush.msra.mxu0 0.0
        %461 = vmatpush.msra.mxu0 0.0
        %462 = vmatpush.msra.mxu0 0.0
        %463 = vmatpush.msra.mxu0 0.0
        %464 = vmatpush.msra.mxu0 0.0
        %465 = vmatpush.msra.mxu0 0.0
        %466 = vmatpush.msra.mxu0 0.0
        %467 = vmatpush.msra.mxu0 0.0
        %468 = vmatpush.msra.mxu0 0.0
        %469 = vmatpush.msra.mxu0 %v255
        %470 = vmatpush.msra.mxu0 %v254
        %471 = vmatpush.msra.mxu0 %v253
        %472 = vmatmul.f32.gmra.mxu0 %v433
        %v473 = vpop.f32.mrf.mxu0
        %v474 = vadd.f32 0.0, %v473
        %475 = vmatmul.f32.gmra.mxu0 %v436
        %v476 = vpop.f32.mrf.mxu0
        %v477 = vadd.f32 0.0, %v476
        %478 = vmatmul.f32.gmra.mxu0 %v439
        %v479 = vpop.f32.mrf.mxu0
        %v480 = vadd.f32 0.0, %v479
        %481 = vmatmul.f32.gmra.mxu0 %v442
        %v482 = vpop.f32.mrf.mxu0
        %v483 = vadd.f32 0.0, %v482
        %484 = vmatmul.f32.gmra.mxu0 %v445
        %v485 = vpop.f32.mrf.mxu0
        %v486 = vadd.f32 0.0, %v485
        %487 = vmatmul.f32.gmra.mxu0 %v448
        %v488 = vpop.f32.mrf.mxu0
        %v489 = vadd.f32 0.0, %v488
        %490 = vmatmul.f32.gmra.mxu0 %v451
        %v491 = vpop.f32.mrf.mxu0
        %v492 = vadd.f32 0.0, %v491
        %493 = vmatmul.f32.gmra.mxu0 %v454
        %v494 = vpop.f32.mrf.mxu0
        %v495 = vadd.f32 0.0, %v494
        %496 = vdwg.mxu0
        %v497 = vld [vmem:[%s2 + $0x20] sm:$0xff]
        %v498 = vld [vmem:[%s2 + $0x28] sm:$0xff]
        %v499 = vld [vmem:[%s2 + $0x30] sm:$0xff]
        %v500 = vld [vmem:[%s2 + $0x38] sm:$0xff]
        %vm501 = vcmask 261120
        %v503 = vsel %vm501, %v474, 0
        %v506 = vsel %vm501, %v477, 0
        %v509 = vsel %vm501, %v480, 0
        %v512 = vsel %vm501, %v483, 0
        %v515 = vsel %vm501, %v486, 0
        %v518 = vsel %vm501, %v489, 0
        %v521 = vsel %vm501, %v492, 0
        %v524 = vsel %vm501, %v495, 0
        %526 = vmatpush.msra.mxu0 0.0
        %527 = vmatpush.msra.mxu0 0.0
        %528 = vmatpush.msra.mxu0 0.0
        %529 = vmatpush.msra.mxu0 0.0
        %530 = vmatpush.msra.mxu0 0.0
        %531 = vmatpush.msra.mxu0 0.0
        %532 = vmatpush.msra.mxu0 0.0
        %533 = vmatpush.msra.mxu0 0.0
        %534 = vmatpush.msra.mxu0 0.0
        %535 = vmatpush.msra.mxu0 0.0
        %536 = vmatpush.msra.mxu0 0.0
        %537 = vmatpush.msra.mxu0 0.0
        %538 = vmatpush.msra.mxu0 %v500
        %539 = vmatpush.msra.mxu0 %v499
        %540 = vmatpush.msra.mxu0 %v498
        %541 = vmatpush.msra.mxu0 %v497
        %542 = vmatmul.f32.gmra.mxu0 %v503
        %v543 = vpop.f32.mrf.mxu0
        %v544 = vadd.f32 0.0, %v543
        %545 = vmatmul.f32.gmra.mxu0 %v506
        %v546 = vpop.f32.mrf.mxu0
        %v547 = vadd.f32 0.0, %v546
        %548 = vmatmul.f32.gmra.mxu0 %v509
        %v549 = vpop.f32.mrf.mxu0
        %v550 = vadd.f32 0.0, %v549
        %551 = vmatmul.f32.gmra.mxu0 %v512
        %v552 = vpop.f32.mrf.mxu0
        %v553 = vadd.f32 0.0, %v552
        %554 = vmatmul.f32.gmra.mxu0 %v515
        %v555 = vpop.f32.mrf.mxu0
        %v556 = vadd.f32 0.0, %v555
        %557 = vmatmul.f32.gmra.mxu0 %v518
        %v558 = vpop.f32.mrf.mxu0
        %v559 = vadd.f32 0.0, %v558
        %560 = vmatmul.f32.gmra.mxu0 %v521
        %v561 = vpop.f32.mrf.mxu0
        %v562 = vadd.f32 0.0, %v561
        %563 = vmatmul.f32.gmra.mxu0 %v524
        %v564 = vpop.f32.mrf.mxu0
        %v565 = vadd.f32 0.0, %v564
        %566 = vdwg.mxu0
        %v568 = vsel %vm501, %v357, 0
        %v571 = vsel %vm501, %v360, 0
        %v574 = vsel %vm501, %v363, 0
        %v577 = vsel %vm501, %v366, 0
        %v580 = vsel %vm501, %v369, 0
        %v583 = vsel %vm501, %v372, 0
        %v586 = vsel %vm501, %v375, 0
        %v589 = vsel %vm501, %v378, 0
        %591 = vmatpush.msra.mxu0 0.0
        %592 = vmatpush.msra.mxu0 0.0
        %593 = vmatpush.msra.mxu0 0.0
        %594 = vmatpush.msra.mxu0 0.0
        %595 = vmatpush.msra.mxu0 0.0
        %596 = vmatpush.msra.mxu0 0.0
        %597 = vmatpush.msra.mxu0 0.0
        %598 = vmatpush.msra.mxu0 0.0
        %599 = vmatpush.msra.mxu0 0.0
        %600 = vmatpush.msra.mxu0 0.0
        %601 = vmatpush.msra.mxu0 0.0
        %602 = vmatpush.msra.mxu0 0.0
        %603 = vmatpush.msra.mxu0 %v383
        %604 = vmatpush.msra.mxu0 %v382
        %605 = vmatpush.msra.mxu0 %v381
        %606 = vmatpush.msra.mxu0 %v380
        %607 = vmatmul.f32.gmra.mxu0 %v568
        %v608 = vpop.f32.mrf.mxu0
        %v609 = vadd.f32 %v544, %v608
        %610 = vmatmul.f32.gmra.mxu0 %v571
        %v611 = vpop.f32.mrf.mxu0
        %v612 = vadd.f32 %v547, %v611
        %613 = vmatmul.f32.gmra.mxu0 %v574
        %v614 = vpop.f32.mrf.mxu0
        %v615 = vadd.f32 %v550, %v614
        %616 = vmatmul.f32.gmra.mxu0 %v577
        %v617 = vpop.f32.mrf.mxu0
        %v618 = vadd.f32 %v553, %v617
        %619 = vmatmul.f32.gmra.mxu0 %v580
        %v620 = vpop.f32.mrf.mxu0
        %v621 = vadd.f32 %v556, %v620
        %622 = vmatmul.f32.gmra.mxu0 %v583
        %v623 = vpop.f32.mrf.mxu0
        %v624 = vadd.f32 %v559, %v623
        %625 = vmatmul.f32.gmra.mxu0 %v586
        %v626 = vpop.f32.mrf.mxu0
        %v627 = vadd.f32 %v562, %v626
        %628 = vmatmul.f32.gmra.mxu0 %v589
        %v629 = vpop.f32.mrf.mxu0
        %v630 = vadd.f32 %v565, %v629
        %631 = vdwg.mxu0
        %632 = vset.pattern.permute.xlu0 2
        %633 = vperm.xlu0 %632, %v258
        %v634 = vpop.permute.xlu0 %633
        %635 = vset.pattern.permute.xlu0 2
        %636 = vperm.xlu0 %635, %v259
        %v637 = vpop.permute.xlu0 %636
        %638 = vset.pattern.permute.xlu0 2
        %639 = vperm.xlu0 %638, %v260
        %v640 = vpop.permute.xlu0 %639
        %641 = vset.pattern.permute.xlu0 2
        %642 = vperm.xlu0 %641, %v261
        %v643 = vpop.permute.xlu0 %642
        %644 = vset.pattern.permute.xlu0 2
        %645 = vperm.xlu0 %644, %v262
        %v646 = vpop.permute.xlu0 %645
        %647 = vset.pattern.permute.xlu0 2
        %648 = vperm.xlu0 %647, %v263
        %v649 = vpop.permute.xlu0 %648
        %650 = vset.pattern.permute.xlu0 2
        %651 = vperm.xlu0 %650, %v264
        %v652 = vpop.permute.xlu0 %651
        %653 = vset.pattern.permute.xlu0 2
        %654 = vperm.xlu0 %653, %v265
        %v655 = vpop.permute.xlu0 %654
        %vm656 = vcmp.eq.s32.totalorder %v257, %v634
        %vm657 = vcmp.eq.s32.totalorder %v257, %v637
        %vm658 = vcmp.eq.s32.totalorder %v257, %v640
        %vm659 = vcmp.eq.s32.totalorder %v257, %v643
        %vm660 = vcmp.eq.s32.totalorder %v257, %v646
        %vm661 = vcmp.eq.s32.totalorder %v257, %v649
        %vm662 = vcmp.eq.s32.totalorder %v257, %v652
        %vm663 = vcmp.eq.s32.totalorder %v257, %v655
        %v664 = vsel %vm656, 1, 0
        %v665 = vsel %vm657, 1, 0
        %v666 = vsel %vm658, 1, 0
        %v667 = vsel %vm659, 1, 0
        %v668 = vsel %vm660, 1, 0
        %v669 = vsel %vm661, 1, 0
        %v670 = vsel %vm662, 1, 0
        %v671 = vsel %vm663, 1, 0
        %v672 = vcvt.s32.f32 %v664
        %v673 = vcvt.s32.f32 %v665
        %v674 = vcvt.s32.f32 %v666
        %v675 = vcvt.s32.f32 %v667
        %v676 = vcvt.s32.f32 %v668
        %v677 = vcvt.s32.f32 %v669
        %v678 = vcvt.s32.f32 %v670
        %v679 = vcvt.s32.f32 %v671
        %v681 = vsel %vm314, %v672, 0
        %v684 = vsel %vm314, %v673, 0
        %v687 = vsel %vm314, %v674, 0
        %v690 = vsel %vm314, %v675, 0
        %v693 = vsel %vm314, %v676, 0
        %v696 = vsel %vm314, %v677, 0
        %v699 = vsel %vm314, %v678, 0
        %v702 = vsel %vm314, %v679, 0
        %704 = vmatpush.msra.mxu0 0.0
        %705 = vmatpush.msra.mxu0 0.0
        %706 = vmatpush.msra.mxu0 0.0
        %707 = vmatpush.msra.mxu0 0.0
        %708 = vmatpush.msra.mxu0 0.0
        %709 = vmatpush.msra.mxu0 0.0
        %710 = vmatpush.msra.mxu0 0.0
        %711 = vmatpush.msra.mxu0 0.0
        %712 = vmatpush.msra.mxu0 0.0
        %713 = vmatpush.msra.mxu0 0.0
        %714 = vmatpush.msra.mxu0 0.0
        %715 = vmatpush.msra.mxu0 0.0
        %716 = vmatpush.msra.mxu0 0.0
        %717 = vmatpush.msra.mxu0 %v255
        %718 = vmatpush.msra.mxu0 %v254
        %719 = vmatpush.msra.mxu0 %v253
        %720 = vmatmul.f32.gmra.mxu0 %v681
        %v721 = vpop.f32.mrf.mxu0
        %v722 = vadd.f32 0.0, %v721
        %723 = vmatmul.f32.gmra.mxu0 %v684
        %v724 = vpop.f32.mrf.mxu0
        %v725 = vadd.f32 0.0, %v724
        %726 = vmatmul.f32.gmra.mxu0 %v687
        %v727 = vpop.f32.mrf.mxu0
        %v728 = vadd.f32 0.0, %v727
        %729 = vmatmul.f32.gmra.mxu0 %v690
        %v730 = vpop.f32.mrf.mxu0
        %v731 = vadd.f32 0.0, %v730
        %732 = vmatmul.f32.gmra.mxu0 %v693
        %v733 = vpop.f32.mrf.mxu0
        %v734 = vadd.f32 0.0, %v733
        %735 = vmatmul.f32.gmra.mxu0 %v696
        %v736 = vpop.f32.mrf.mxu0
        %v737 = vadd.f32 0.0, %v736
        %738 = vmatmul.f32.gmra.mxu0 %v699
        %v739 = vpop.f32.mrf.mxu0
        %v740 = vadd.f32 0.0, %v739
        %741 = vmatmul.f32.gmra.mxu0 %v702
        %v742 = vpop.f32.mrf.mxu0
        %v743 = vadd.f32 0.0, %v742
        %744 = vdwg.mxu0
        %v745 = vld [vmem:[%s2 + $0x40] sm:$0xff]
        %v746 = vld [vmem:[%s2 + $0x48] sm:$0xff]
        %v747 = vld [vmem:[%s2 + $0x50] sm:$0xff]
        %v748 = vld [vmem:[%s2 + $0x58] sm:$0xff]
        %v750 = vsel %vm501, %v722, 0
        %v753 = vsel %vm501, %v725, 0
        %v756 = vsel %vm501, %v728, 0
        %v759 = vsel %vm501, %v731, 0
        %v762 = vsel %vm501, %v734, 0
        %v765 = vsel %vm501, %v737, 0
        %v768 = vsel %vm501, %v740, 0
        %v771 = vsel %vm501, %v743, 0
        %773 = vmatpush.msra.mxu0 0.0
        %774 = vmatpush.msra.mxu0 0.0
        %775 = vmatpush.msra.mxu0 0.0
        %776 = vmatpush.msra.mxu0 0.0
        %777 = vmatpush.msra.mxu0 0.0
        %778 = vmatpush.msra.mxu0 0.0
        %779 = vmatpush.msra.mxu0 0.0
        %780 = vmatpush.msra.mxu0 0.0
        %781 = vmatpush.msra.mxu0 0.0
        %782 = vmatpush.msra.mxu0 0.0
        %783 = vmatpush.msra.mxu0 0.0
        %784 = vmatpush.msra.mxu0 0.0
        %785 = vmatpush.msra.mxu0 %v748
        %786 = vmatpush.msra.mxu0 %v747
        %787 = vmatpush.msra.mxu0 %v746
        %788 = vmatpush.msra.mxu0 %v745
        %789 = vmatmul.f32.gmra.mxu0 %v750
        %v790 = vpop.f32.mrf.mxu0
        %v791 = vadd.f32 0.0, %v790
        %792 = vmatmul.f32.gmra.mxu0 %v753
        %v793 = vpop.f32.mrf.mxu0
        %v794 = vadd.f32 0.0, %v793
        %795 = vmatmul.f32.gmra.mxu0 %v756
        %v796 = vpop.f32.mrf.mxu0
        %v797 = vadd.f32 0.0, %v796
        %798 = vmatmul.f32.gmra.mxu0 %v759
        %v799 = vpop.f32.mrf.mxu0
        %v800 = vadd.f32 0.0, %v799
        %801 = vmatmul.f32.gmra.mxu0 %v762
        %v802 = vpop.f32.mrf.mxu0
        %v803 = vadd.f32 0.0, %v802
        %804 = vmatmul.f32.gmra.mxu0 %v765
        %v805 = vpop.f32.mrf.mxu0
        %v806 = vadd.f32 0.0, %v805
        %807 = vmatmul.f32.gmra.mxu0 %v768
        %v808 = vpop.f32.mrf.mxu0
        %v809 = vadd.f32 0.0, %v808
        %810 = vmatmul.f32.gmra.mxu0 %v771
        %v811 = vpop.f32.mrf.mxu0
        %v812 = vadd.f32 0.0, %v811
        %813 = vdwg.mxu0
        %v814 = vadd.f32 %v609, %v791
        %v815 = vadd.f32 %v612, %v794
        %v816 = vadd.f32 %v615, %v797
        %v817 = vadd.f32 %v618, %v800
        %v818 = vadd.f32 %v621, %v803
        %v819 = vadd.f32 %v624, %v806
        %v820 = vadd.f32 %v627, %v809
        %v821 = vadd.f32 %v630, %v812
        %822 = vset.pattern.permute.xlu0 3
        %823 = vperm.xlu0 %822, %v258
        %v824 = vpop.permute.xlu0 %823
        %825 = vset.pattern.permute.xlu0 3
        %826 = vperm.xlu0 %825, %v259
        %v827 = vpop.permute.xlu0 %826
        %828 = vset.pattern.permute.xlu0 3
        %829 = vperm.xlu0 %828, %v260
        %v830 = vpop.permute.xlu0 %829
        %831 = vset.pattern.permute.xlu0 3
        %832 = vperm.xlu0 %831, %v261
        %v833 = vpop.permute.xlu0 %832
        %834 = vset.pattern.permute.xlu0 3
        %835 = vperm.xlu0 %834, %v262
        %v836 = vpop.permute.xlu0 %835
        %837 = vset.pattern.permute.xlu0 3
        %838 = vperm.xlu0 %837, %v263
        %v839 = vpop.permute.xlu0 %838
        %840 = vset.pattern.permute.xlu0 3
        %841 = vperm.xlu0 %840, %v264
        %v842 = vpop.permute.xlu0 %841
        %843 = vset.pattern.permute.xlu0 3
        %844 = vperm.xlu0 %843, %v265
        %v845 = vpop.permute.xlu0 %844
        %vm846 = vcmp.eq.s32.totalorder %v257, %v824
        %vm847 = vcmp.eq.s32.totalorder %v257, %v827
        %vm848 = vcmp.eq.s32.totalorder %v257, %v830
        %vm849 = vcmp.eq.s32.totalorder %v257, %v833
        %vm850 = vcmp.eq.s32.totalorder %v257, %v836
        %vm851 = vcmp.eq.s32.totalorder %v257, %v839
        %vm852 = vcmp.eq.s32.totalorder %v257, %v842
        %vm853 = vcmp.eq.s32.totalorder %v257, %v845
        %v854 = vsel %vm846, 1, 0
        %v855 = vsel %vm847, 1, 0
        %v856 = vsel %vm848, 1, 0
        %v857 = vsel %vm849, 1, 0
        %v858 = vsel %vm850, 1, 0
        %v859 = vsel %vm851, 1, 0
        %v860 = vsel %vm852, 1, 0
        %v861 = vsel %vm853, 1, 0
        %v862 = vcvt.s32.f32 %v854
        %v863 = vcvt.s32.f32 %v855
        %v864 = vcvt.s32.f32 %v856
        %v865 = vcvt.s32.f32 %v857
        %v866 = vcvt.s32.f32 %v858
        %v867 = vcvt.s32.f32 %v859
        %v868 = vcvt.s32.f32 %v860
        %v869 = vcvt.s32.f32 %v861
        %v871 = vsel %vm314, %v862, 0
        %v874 = vsel %vm314, %v863, 0
        %v877 = vsel %vm314, %v864, 0
        %v880 = vsel %vm314, %v865, 0
        %v883 = vsel %vm314, %v866, 0
        %v886 = vsel %vm314, %v867, 0
        %v889 = vsel %vm314, %v868, 0
        %v892 = vsel %vm314, %v869, 0
        %894 = vmatpush.msra.mxu0 0.0
        %895 = vmatpush.msra.mxu0 0.0
        %896 = vmatpush.msra.mxu0 0.0
        %897 = vmatpush.msra.mxu0 0.0
        %898 = vmatpush.msra.mxu0 0.0
        %899 = vmatpush.msra.mxu0 0.0
        %900 = vmatpush.msra.mxu0 0.0
        %901 = vmatpush.msra.mxu0 0.0
        %902 = vmatpush.msra.mxu0 0.0
        %903 = vmatpush.msra.mxu0 0.0
        %904 = vmatpush.msra.mxu0 0.0
        %905 = vmatpush.msra.mxu0 0.0
        %906 = vmatpush.msra.mxu0 0.0
        %907 = vmatpush.msra.mxu0 %v255
        %908 = vmatpush.msra.mxu0 %v254
        %909 = vmatpush.msra.mxu0 %v253
        %910 = vmatmul.f32.gmra.mxu0 %v871
        %v911 = vpop.f32.mrf.mxu0
        %v912 = vadd.f32 0.0, %v911
        %913 = vmatmul.f32.gmra.mxu0 %v874
        %v914 = vpop.f32.mrf.mxu0
        %v915 = vadd.f32 0.0, %v914
        %916 = vmatmul.f32.gmra.mxu0 %v877
        %v917 = vpop.f32.mrf.mxu0
        %v918 = vadd.f32 0.0, %v917
        %919 = vmatmul.f32.gmra.mxu0 %v880
        %v920 = vpop.f32.mrf.mxu0
        %v921 = vadd.f32 0.0, %v920
        %922 = vmatmul.f32.gmra.mxu0 %v883
        %v923 = vpop.f32.mrf.mxu0
        %v924 = vadd.f32 0.0, %v923
        %925 = vmatmul.f32.gmra.mxu0 %v886
        %v926 = vpop.f32.mrf.mxu0
        %v927 = vadd.f32 0.0, %v926
        %928 = vmatmul.f32.gmra.mxu0 %v889
        %v929 = vpop.f32.mrf.mxu0
        %v930 = vadd.f32 0.0, %v929
        %931 = vmatmul.f32.gmra.mxu0 %v892
        %v932 = vpop.f32.mrf.mxu0
        %v933 = vadd.f32 0.0, %v932
        %934 = vdwg.mxu0
        %v935 = vld [vmem:[%s2 + $0x60] sm:$0xff]
        %v936 = vld [vmem:[%s2 + $0x68] sm:$0xff]
        %v937 = vld [vmem:[%s2 + $0x70] sm:$0xff]
        %v938 = vld [vmem:[%s2 + $0x78] sm:$0xff]
        %v940 = vsel %vm501, %v912, 0
        %v943 = vsel %vm501, %v915, 0
        %v946 = vsel %vm501, %v918, 0
        %v949 = vsel %vm501, %v921, 0
        %v952 = vsel %vm501, %v924, 0
        %v955 = vsel %vm501, %v927, 0
        %v958 = vsel %vm501, %v930, 0
        %v961 = vsel %vm501, %v933, 0
        %963 = vmatpush.msra.mxu0 0.0
        %964 = vmatpush.msra.mxu0 0.0
        %965 = vmatpush.msra.mxu0 0.0
        %966 = vmatpush.msra.mxu0 0.0
        %967 = vmatpush.msra.mxu0 0.0
        %968 = vmatpush.msra.mxu0 0.0
        %969 = vmatpush.msra.mxu0 0.0
        %970 = vmatpush.msra.mxu0 0.0
        %971 = vmatpush.msra.mxu0 0.0
        %972 = vmatpush.msra.mxu0 0.0
        %973 = vmatpush.msra.mxu0 0.0
        %974 = vmatpush.msra.mxu0 0.0
        %975 = vmatpush.msra.mxu0 %v938
        %976 = vmatpush.msra.mxu0 %v937
        %977 = vmatpush.msra.mxu0 %v936
        %978 = vmatpush.msra.mxu0 %v935
        %979 = vmatmul.f32.gmra.mxu0 %v940
        %v980 = vpop.f32.mrf.mxu0
        %v981 = vadd.f32 0.0, %v980
        %982 = vmatmul.f32.gmra.mxu0 %v943
        %v983 = vpop.f32.mrf.mxu0
        %v984 = vadd.f32 0.0, %v983
        %985 = vmatmul.f32.gmra.mxu0 %v946
        %v986 = vpop.f32.mrf.mxu0
        %v987 = vadd.f32 0.0, %v986
        %988 = vmatmul.f32.gmra.mxu0 %v949
        %v989 = vpop.f32.mrf.mxu0
        %v990 = vadd.f32 0.0, %v989
        %991 = vmatmul.f32.gmra.mxu0 %v952
        %v992 = vpop.f32.mrf.mxu0
        %v993 = vadd.f32 0.0, %v992
        %994 = vmatmul.f32.gmra.mxu0 %v955
        %v995 = vpop.f32.mrf.mxu0
        %v996 = vadd.f32 0.0, %v995
        %997 = vmatmul.f32.gmra.mxu0 %v958
        %v998 = vpop.f32.mrf.mxu0
        %v999 = vadd.f32 0.0, %v998
        %1000 = vmatmul.f32.gmra.mxu0 %v961
        %v1001 = vpop.f32.mrf.mxu0
        %v1002 = vadd.f32 0.0, %v1001
        %1003 = vdwg.mxu0
        %v1004 = vadd.f32 %v814, %v981
        %v1005 = vadd.f32 %v815, %v984
        %v1006 = vadd.f32 %v816, %v987
        %v1007 = vadd.f32 %v817, %v990
        %v1008 = vadd.f32 %v818, %v993
        %v1009 = vadd.f32 %v819, %v996
        %v1010 = vadd.f32 %v820, %v999
        %v1011 = vadd.f32 %v821, %v1002
        %1012 = vset.pattern.permute.xlu0 4
        %1013 = vperm.xlu0 %1012, %v258
        %v1014 = vpop.permute.xlu0 %1013
        %1015 = vset.pattern.permute.xlu0 4
        %1016 = vperm.xlu0 %1015, %v259
        %v1017 = vpop.permute.xlu0 %1016
        %1018 = vset.pattern.permute.xlu0 4
        %1019 = vperm.xlu0 %1018, %v260
        %v1020 = vpop.permute.xlu0 %1019
        %1021 = vset.pattern.permute.xlu0 4
        %1022 = vperm.xlu0 %1021, %v261
        %v1023 = vpop.permute.xlu0 %1022
        %1024 = vset.pattern.permute.xlu0 4
        %1025 = vperm.xlu0 %1024, %v262
        %v1026 = vpop.permute.xlu0 %1025
        %1027 = vset.pattern.permute.xlu0 4
        %1028 = vperm.xlu0 %1027, %v263
        %v1029 = vpop.permute.xlu0 %1028
        %1030 = vset.pattern.permute.xlu0 4
        %1031 = vperm.xlu0 %1030, %v264
        %v1032 = vpop.permute.xlu0 %1031
        %1033 = vset.pattern.permute.xlu0 4
        %1034 = vperm.xlu0 %1033, %v265
        %v1035 = vpop.permute.xlu0 %1034
        %vm1036 = vcmp.eq.s32.totalorder %v257, %v1014
        %vm1037 = vcmp.eq.s32.totalorder %v257, %v1017
        %vm1038 = vcmp.eq.s32.totalorder %v257, %v1020
        %vm1039 = vcmp.eq.s32.totalorder %v257, %v1023
        %vm1040 = vcmp.eq.s32.totalorder %v257, %v1026
        %vm1041 = vcmp.eq.s32.totalorder %v257, %v1029
        %vm1042 = vcmp.eq.s32.totalorder %v257, %v1032
        %vm1043 = vcmp.eq.s32.totalorder %v257, %v1035
        %v1044 = vsel %vm1036, 1, 0
        %v1045 = vsel %vm1037, 1, 0
        %v1046 = vsel %vm1038, 1, 0
        %v1047 = vsel %vm1039, 1, 0
        %v1048 = vsel %vm1040, 1, 0
        %v1049 = vsel %vm1041, 1, 0
        %v1050 = vsel %vm1042, 1, 0
        %v1051 = vsel %vm1043, 1, 0
        %v1052 = vcvt.s32.f32 %v1044
        %v1053 = vcvt.s32.f32 %v1045
        %v1054 = vcvt.s32.f32 %v1046
        %v1055 = vcvt.s32.f32 %v1047
        %v1056 = vcvt.s32.f32 %v1048
        %v1057 = vcvt.s32.f32 %v1049
        %v1058 = vcvt.s32.f32 %v1050
        %v1059 = vcvt.s32.f32 %v1051
        %v1061 = vsel %vm314, %v1052, 0
        %v1064 = vsel %vm314, %v1053, 0
        %v1067 = vsel %vm314, %v1054, 0
        %v1070 = vsel %vm314, %v1055, 0
        %v1073 = vsel %vm314, %v1056, 0
        %v1076 = vsel %vm314, %v1057, 0
        %v1079 = vsel %vm314, %v1058, 0
        %v1082 = vsel %vm314, %v1059, 0
        %1084 = vmatpush.msra.mxu0 0.0
        %1085 = vmatpush.msra.mxu0 0.0
        %1086 = vmatpush.msra.mxu0 0.0
        %1087 = vmatpush.msra.mxu0 0.0
        %1088 = vmatpush.msra.mxu0 0.0
        %1089 = vmatpush.msra.mxu0 0.0
        %1090 = vmatpush.msra.mxu0 0.0
        %1091 = vmatpush.msra.mxu0 0.0
        %1092 = vmatpush.msra.mxu0 0.0
        %1093 = vmatpush.msra.mxu0 0.0
        %1094 = vmatpush.msra.mxu0 0.0
        %1095 = vmatpush.msra.mxu0 0.0
        %1096 = vmatpush.msra.mxu0 0.0
        %1097 = vmatpush.msra.mxu0 %v255
        %1098 = vmatpush.msra.mxu0 %v254
        %1099 = vmatpush.msra.mxu0 %v253
        %1100 = vmatmul.f32.gmra.mxu0 %v1061
        %v1101 = vpop.f32.mrf.mxu0
        %v1102 = vadd.f32 0.0, %v1101
        %1103 = vmatmul.f32.gmra.mxu0 %v1064
        %v1104 = vpop.f32.mrf.mxu0
        %v1105 = vadd.f32 0.0, %v1104
        %1106 = vmatmul.f32.gmra.mxu0 %v1067
        %v1107 = vpop.f32.mrf.mxu0
        %v1108 = vadd.f32 0.0, %v1107
        %1109 = vmatmul.f32.gmra.mxu0 %v1070
        %v1110 = vpop.f32.mrf.mxu0
        %v1111 = vadd.f32 0.0, %v1110
        %1112 = vmatmul.f32.gmra.mxu0 %v1073
        %v1113 = vpop.f32.mrf.mxu0
        %v1114 = vadd.f32 0.0, %v1113
        %1115 = vmatmul.f32.gmra.mxu0 %v1076
        %v1116 = vpop.f32.mrf.mxu0
        %v1117 = vadd.f32 0.0, %v1116
        %1118 = vmatmul.f32.gmra.mxu0 %v1079
        %v1119 = vpop.f32.mrf.mxu0
        %v1120 = vadd.f32 0.0, %v1119
        %1121 = vmatmul.f32.gmra.mxu0 %v1082
        %v1122 = vpop.f32.mrf.mxu0
        %v1123 = vadd.f32 0.0, %v1122
        %1124 = vdwg.mxu0
        %v1125 = vld [vmem:[%s2 + $0x80] sm:$0xff]
        %v1126 = vld [vmem:[%s2 + $0x88] sm:$0xff]
        %v1127 = vld [vmem:[%s2 + $0x90] sm:$0xff]
        %v1128 = vld [vmem:[%s2 + $0x98] sm:$0xff]
        %v1130 = vsel %vm501, %v1102, 0
        %v1133 = vsel %vm501, %v1105, 0
        %v1136 = vsel %vm501, %v1108, 0
        %v1139 = vsel %vm501, %v1111, 0
        %v1142 = vsel %vm501, %v1114, 0
        %v1145 = vsel %vm501, %v1117, 0
        %v1148 = vsel %vm501, %v1120, 0
        %v1151 = vsel %vm501, %v1123, 0
        %1153 = vmatpush.msra.mxu0 0.0
        %1154 = vmatpush.msra.mxu0 0.0
        %1155 = vmatpush.msra.mxu0 0.0
        %1156 = vmatpush.msra.mxu0 0.0
        %1157 = vmatpush.msra.mxu0 0.0
        %1158 = vmatpush.msra.mxu0 0.0
        %1159 = vmatpush.msra.mxu0 0.0
        %1160 = vmatpush.msra.mxu0 0.0
        %1161 = vmatpush.msra.mxu0 0.0
        %1162 = vmatpush.msra.mxu0 0.0
        %1163 = vmatpush.msra.mxu0 0.0
        %1164 = vmatpush.msra.mxu0 0.0
        %1165 = vmatpush.msra.mxu0 %v1128
        %1166 = vmatpush.msra.mxu0 %v1127
        %1167 = vmatpush.msra.mxu0 %v1126
        %1168 = vmatpush.msra.mxu0 %v1125
        %1169 = vmatmul.f32.gmra.mxu0 %v1130
        %v1170 = vpop.f32.mrf.mxu0
        %v1171 = vadd.f32 0.0, %v1170
        %1172 = vmatmul.f32.gmra.mxu0 %v1133
        %v1173 = vpop.f32.mrf.mxu0
        %v1174 = vadd.f32 0.0, %v1173
        %1175 = vmatmul.f32.gmra.mxu0 %v1136
        %v1176 = vpop.f32.mrf.mxu0
        %v1177 = vadd.f32 0.0, %v1176
        %1178 = vmatmul.f32.gmra.mxu0 %v1139
        %v1179 = vpop.f32.mrf.mxu0
        %v1180 = vadd.f32 0.0, %v1179
        %1181 = vmatmul.f32.gmra.mxu0 %v1142
        %v1182 = vpop.f32.mrf.mxu0
        %v1183 = vadd.f32 0.0, %v1182
        %1184 = vmatmul.f32.gmra.mxu0 %v1145
        %v1185 = vpop.f32.mrf.mxu0
        %v1186 = vadd.f32 0.0, %v1185
        %1187 = vmatmul.f32.gmra.mxu0 %v1148
        %v1188 = vpop.f32.mrf.mxu0
        %v1189 = vadd.f32 0.0, %v1188
        %1190 = vmatmul.f32.gmra.mxu0 %v1151
        %v1191 = vpop.f32.mrf.mxu0
        %v1192 = vadd.f32 0.0, %v1191
        %1193 = vdwg.mxu0
        %v1194 = vadd.f32 %v1004, %v1171
        %v1195 = vadd.f32 %v1005, %v1174
        %v1196 = vadd.f32 %v1006, %v1177
        %v1197 = vadd.f32 %v1007, %v1180
        %v1198 = vadd.f32 %v1008, %v1183
        %v1199 = vadd.f32 %v1009, %v1186
        %v1200 = vadd.f32 %v1010, %v1189
        %v1201 = vadd.f32 %v1011, %v1192
        %1202 = vset.pattern.permute.xlu0 5
        %1203 = vperm.xlu0 %1202, %v258
        %v1204 = vpop.permute.xlu0 %1203
        %1205 = vset.pattern.permute.xlu0 5
        %1206 = vperm.xlu0 %1205, %v259
        %v1207 = vpop.permute.xlu0 %1206
        %1208 = vset.pattern.permute.xlu0 5
        %1209 = vperm.xlu0 %1208, %v260
        %v1210 = vpop.permute.xlu0 %1209
        %1211 = vset.pattern.permute.xlu0 5
        %1212 = vperm.xlu0 %1211, %v261
        %v1213 = vpop.permute.xlu0 %1212
        %1214 = vset.pattern.permute.xlu0 5
        %1215 = vperm.xlu0 %1214, %v262
        %v1216 = vpop.permute.xlu0 %1215
        %1217 = vset.pattern.permute.xlu0 5
        %1218 = vperm.xlu0 %1217, %v263
        %v1219 = vpop.permute.xlu0 %1218
        %1220 = vset.pattern.permute.xlu0 5
        %1221 = vperm.xlu0 %1220, %v264
        %v1222 = vpop.permute.xlu0 %1221
        %1223 = vset.pattern.permute.xlu0 5
        %1224 = vperm.xlu0 %1223, %v265
        %v1225 = vpop.permute.xlu0 %1224
        %vm1226 = vcmp.eq.s32.totalorder %v257, %v1204
        %vm1227 = vcmp.eq.s32.totalorder %v257, %v1207
        %vm1228 = vcmp.eq.s32.totalorder %v257, %v1210
        %vm1229 = vcmp.eq.s32.totalorder %v257, %v1213
        %vm1230 = vcmp.eq.s32.totalorder %v257, %v1216
        %vm1231 = vcmp.eq.s32.totalorder %v257, %v1219
        %vm1232 = vcmp.eq.s32.totalorder %v257, %v1222
        %vm1233 = vcmp.eq.s32.totalorder %v257, %v1225
        %v1234 = vsel %vm1226, 1, 0
        %v1235 = vsel %vm1227, 1, 0
        %v1236 = vsel %vm1228, 1, 0
        %v1237 = vsel %vm1229, 1, 0
        %v1238 = vsel %vm1230, 1, 0
        %v1239 = vsel %vm1231, 1, 0
        %v1240 = vsel %vm1232, 1, 0
        %v1241 = vsel %vm1233, 1, 0
        %v1242 = vcvt.s32.f32 %v1234
        %v1243 = vcvt.s32.f32 %v1235
        %v1244 = vcvt.s32.f32 %v1236
        %v1245 = vcvt.s32.f32 %v1237
        %v1246 = vcvt.s32.f32 %v1238
        %v1247 = vcvt.s32.f32 %v1239
        %v1248 = vcvt.s32.f32 %v1240
        %v1249 = vcvt.s32.f32 %v1241
        %v1251 = vsel %vm314, %v1242, 0
        %v1254 = vsel %vm314, %v1243, 0
        %v1257 = vsel %vm314, %v1244, 0
        %v1260 = vsel %vm314, %v1245, 0
        %v1263 = vsel %vm314, %v1246, 0
        %v1266 = vsel %vm314, %v1247, 0
        %v1269 = vsel %vm314, %v1248, 0
        %v1272 = vsel %vm314, %v1249, 0
        %1274 = vmatpush.msra.mxu0 0.0
        %1275 = vmatpush.msra.mxu0 0.0
        %1276 = vmatpush.msra.mxu0 0.0
        %1277 = vmatpush.msra.mxu0 0.0
        %1278 = vmatpush.msra.mxu0 0.0
        %1279 = vmatpush.msra.mxu0 0.0
        %1280 = vmatpush.msra.mxu0 0.0
        %1281 = vmatpush.msra.mxu0 0.0
        %1282 = vmatpush.msra.mxu0 0.0
        %1283 = vmatpush.msra.mxu0 0.0
        %1284 = vmatpush.msra.mxu0 0.0
        %1285 = vmatpush.msra.mxu0 0.0
        %1286 = vmatpush.msra.mxu0 0.0
        %1287 = vmatpush.msra.mxu0 %v255
        %1288 = vmatpush.msra.mxu0 %v254
        %1289 = vmatpush.msra.mxu0 %v253
        %1290 = vmatmul.f32.gmra.mxu0 %v1251
        %v1291 = vpop.f32.mrf.mxu0
        %v1292 = vadd.f32 0.0, %v1291
        %1293 = vmatmul.f32.gmra.mxu0 %v1254
        %v1294 = vpop.f32.mrf.mxu0
        %v1295 = vadd.f32 0.0, %v1294
        %1296 = vmatmul.f32.gmra.mxu0 %v1257
        %v1297 = vpop.f32.mrf.mxu0
        %v1298 = vadd.f32 0.0, %v1297
        %1299 = vmatmul.f32.gmra.mxu0 %v1260
        %v1300 = vpop.f32.mrf.mxu0
        %v1301 = vadd.f32 0.0, %v1300
        %1302 = vmatmul.f32.gmra.mxu0 %v1263
        %v1303 = vpop.f32.mrf.mxu0
        %v1304 = vadd.f32 0.0, %v1303
        %1305 = vmatmul.f32.gmra.mxu0 %v1266
        %v1306 = vpop.f32.mrf.mxu0
        %v1307 = vadd.f32 0.0, %v1306
        %1308 = vmatmul.f32.gmra.mxu0 %v1269
        %v1309 = vpop.f32.mrf.mxu0
        %v1310 = vadd.f32 0.0, %v1309
        %1311 = vmatmul.f32.gmra.mxu0 %v1272
        %v1312 = vpop.f32.mrf.mxu0
        %v1313 = vadd.f32 0.0, %v1312
        %1314 = vdwg.mxu0
        %v1315 = vld [vmem:[%s2 + $0xa0] sm:$0xff]
        %v1316 = vld [vmem:[%s2 + $0xa8] sm:$0xff]
        %v1317 = vld [vmem:[%s2 + $0xb0] sm:$0xff]
        %v1318 = vld [vmem:[%s2 + $0xb8] sm:$0xff]
        %v1320 = vsel %vm501, %v1292, 0
        %v1323 = vsel %vm501, %v1295, 0
        %v1326 = vsel %vm501, %v1298, 0
        %v1329 = vsel %vm501, %v1301, 0
        %v1332 = vsel %vm501, %v1304, 0
        %v1335 = vsel %vm501, %v1307, 0
        %v1338 = vsel %vm501, %v1310, 0
        %v1341 = vsel %vm501, %v1313, 0
        %1343 = vmatpush.msra.mxu0 0.0
        %1344 = vmatpush.msra.mxu0 0.0
        %1345 = vmatpush.msra.mxu0 0.0
        %1346 = vmatpush.msra.mxu0 0.0
        %1347 = vmatpush.msra.mxu0 0.0
        %1348 = vmatpush.msra.mxu0 0.0
        %1349 = vmatpush.msra.mxu0 0.0
        %1350 = vmatpush.msra.mxu0 0.0
        %1351 = vmatpush.msra.mxu0 0.0
        %1352 = vmatpush.msra.mxu0 0.0
        %1353 = vmatpush.msra.mxu0 0.0
        %1354 = vmatpush.msra.mxu0 0.0
        %1355 = vmatpush.msra.mxu0 %v1318
        %1356 = vmatpush.msra.mxu0 %v1317
        %1357 = vmatpush.msra.mxu0 %v1316
        %1358 = vmatpush.msra.mxu0 %v1315
        %1359 = vmatmul.f32.gmra.mxu0 %v1320
        %v1360 = vpop.f32.mrf.mxu0
        %v1361 = vadd.f32 0.0, %v1360
        %1362 = vmatmul.f32.gmra.mxu0 %v1323
        %v1363 = vpop.f32.mrf.mxu0
        %v1364 = vadd.f32 0.0, %v1363
        %1365 = vmatmul.f32.gmra.mxu0 %v1326
        %v1366 = vpop.f32.mrf.mxu0
        %v1367 = vadd.f32 0.0, %v1366
        %1368 = vmatmul.f32.gmra.mxu0 %v1329
        %v1369 = vpop.f32.mrf.mxu0
        %v1370 = vadd.f32 0.0, %v1369
        %1371 = vmatmul.f32.gmra.mxu0 %v1332
        %v1372 = vpop.f32.mrf.mxu0
        %v1373 = vadd.f32 0.0, %v1372
        %1374 = vmatmul.f32.gmra.mxu0 %v1335
        %v1375 = vpop.f32.mrf.mxu0
        %v1376 = vadd.f32 0.0, %v1375
        %1377 = vmatmul.f32.gmra.mxu0 %v1338
        %v1378 = vpop.f32.mrf.mxu0
        %v1379 = vadd.f32 0.0, %v1378
        %1380 = vmatmul.f32.gmra.mxu0 %v1341
        %v1381 = vpop.f32.mrf.mxu0
        %v1382 = vadd.f32 0.0, %v1381
        %1383 = vdwg.mxu0
        %v1384 = vadd.f32 %v1194, %v1361
        %v1385 = vadd.f32 %v1195, %v1364
        %v1386 = vadd.f32 %v1196, %v1367
        %v1387 = vadd.f32 %v1197, %v1370
        %v1388 = vadd.f32 %v1198, %v1373
        %v1389 = vadd.f32 %v1199, %v1376
        %v1390 = vadd.f32 %v1200, %v1379
        %v1391 = vadd.f32 %v1201, %v1382
        %1392 = vset.pattern.permute.xlu0 6
        %1393 = vperm.xlu0 %1392, %v258
        %v1394 = vpop.permute.xlu0 %1393
        %1395 = vset.pattern.permute.xlu0 6
        %1396 = vperm.xlu0 %1395, %v259
        %v1397 = vpop.permute.xlu0 %1396
        %1398 = vset.pattern.permute.xlu0 6
        %1399 = vperm.xlu0 %1398, %v260
        %v1400 = vpop.permute.xlu0 %1399
        %1401 = vset.pattern.permute.xlu0 6
        %1402 = vperm.xlu0 %1401, %v261
        %v1403 = vpop.permute.xlu0 %1402
        %1404 = vset.pattern.permute.xlu0 6
        %1405 = vperm.xlu0 %1404, %v262
        %v1406 = vpop.permute.xlu0 %1405
        %1407 = vset.pattern.permute.xlu0 6
        %1408 = vperm.xlu0 %1407, %v263
        %v1409 = vpop.permute.xlu0 %1408
        %1410 = vset.pattern.permute.xlu0 6
        %1411 = vperm.xlu0 %1410, %v264
        %v1412 = vpop.permute.xlu0 %1411
        %1413 = vset.pattern.permute.xlu0 6
        %1414 = vperm.xlu0 %1413, %v265
        %v1415 = vpop.permute.xlu0 %1414
        %vm1416 = vcmp.eq.s32.totalorder %v257, %v1394
        %vm1417 = vcmp.eq.s32.totalorder %v257, %v1397
        %vm1418 = vcmp.eq.s32.totalorder %v257, %v1400
        %vm1419 = vcmp.eq.s32.totalorder %v257, %v1403
        %vm1420 = vcmp.eq.s32.totalorder %v257, %v1406
        %vm1421 = vcmp.eq.s32.totalorder %v257, %v1409
        %vm1422 = vcmp.eq.s32.totalorder %v257, %v1412
        %vm1423 = vcmp.eq.s32.totalorder %v257, %v1415
        %v1424 = vsel %vm1416, 1, 0
        %v1425 = vsel %vm1417, 1, 0
        %v1426 = vsel %vm1418, 1, 0
        %v1427 = vsel %vm1419, 1, 0
        %v1428 = vsel %vm1420, 1, 0
        %v1429 = vsel %vm1421, 1, 0
        %v1430 = vsel %vm1422, 1, 0
        %v1431 = vsel %vm1423, 1, 0
        %v1432 = vcvt.s32.f32 %v1424
        %v1433 = vcvt.s32.f32 %v1425
        %v1434 = vcvt.s32.f32 %v1426
        %v1435 = vcvt.s32.f32 %v1427
        %v1436 = vcvt.s32.f32 %v1428
        %v1437 = vcvt.s32.f32 %v1429
        %v1438 = vcvt.s32.f32 %v1430
        %v1439 = vcvt.s32.f32 %v1431
        %v1441 = vsel %vm314, %v1432, 0
        %v1444 = vsel %vm314, %v1433, 0
        %v1447 = vsel %vm314, %v1434, 0
        %v1450 = vsel %vm314, %v1435, 0
        %v1453 = vsel %vm314, %v1436, 0
        %v1456 = vsel %vm314, %v1437, 0
        %v1459 = vsel %vm314, %v1438, 0
        %v1462 = vsel %vm314, %v1439, 0
        %1464 = vmatpush.msra.mxu0 0.0
        %1465 = vmatpush.msra.mxu0 0.0
        %1466 = vmatpush.msra.mxu0 0.0
        %1467 = vmatpush.msra.mxu0 0.0
        %1468 = vmatpush.msra.mxu0 0.0
        %1469 = vmatpush.msra.mxu0 0.0
        %1470 = vmatpush.msra.mxu0 0.0
        %1471 = vmatpush.msra.mxu0 0.0
        %1472 = vmatpush.msra.mxu0 0.0
        %1473 = vmatpush.msra.mxu0 0.0
        %1474 = vmatpush.msra.mxu0 0.0
        %1475 = vmatpush.msra.mxu0 0.0
        %1476 = vmatpush.msra.mxu0 0.0
        %1477 = vmatpush.msra.mxu0 %v255
        %1478 = vmatpush.msra.mxu0 %v254
        %1479 = vmatpush.msra.mxu0 %v253
        %1480 = vmatmul.f32.gmra.mxu0 %v1441
        %v1481 = vpop.f32.mrf.mxu0
        %v1482 = vadd.f32 0.0, %v1481
        %1483 = vmatmul.f32.gmra.mxu0 %v1444
        %v1484 = vpop.f32.mrf.mxu0
        %v1485 = vadd.f32 0.0, %v1484
        %1486 = vmatmul.f32.gmra.mxu0 %v1447
        %v1487 = vpop.f32.mrf.mxu0
        %v1488 = vadd.f32 0.0, %v1487
        %1489 = vmatmul.f32.gmra.mxu0 %v1450
        %v1490 = vpop.f32.mrf.mxu0
        %v1491 = vadd.f32 0.0, %v1490
        %1492 = vmatmul.f32.gmra.mxu0 %v1453
        %v1493 = vpop.f32.mrf.mxu0
        %v1494 = vadd.f32 0.0, %v1493
        %1495 = vmatmul.f32.gmra.mxu0 %v1456
        %v1496 = vpop.f32.mrf.mxu0
        %v1497 = vadd.f32 0.0, %v1496
        %1498 = vmatmul.f32.gmra.mxu0 %v1459
        %v1499 = vpop.f32.mrf.mxu0
        %v1500 = vadd.f32 0.0, %v1499
        %1501 = vmatmul.f32.gmra.mxu0 %v1462
        %v1502 = vpop.f32.mrf.mxu0
        %v1503 = vadd.f32 0.0, %v1502
        %1504 = vdwg.mxu0
        %v1505 = vld [vmem:[%s2 + $0xc0] sm:$0xff]
        %v1506 = vld [vmem:[%s2 + $0xc8] sm:$0xff]
        %v1507 = vld [vmem:[%s2 + $0xd0] sm:$0xff]
        %v1508 = vld [vmem:[%s2 + $0xd8] sm:$0xff]
        %v1510 = vsel %vm501, %v1482, 0
        %v1513 = vsel %vm501, %v1485, 0
        %v1516 = vsel %vm501, %v1488, 0
        %v1519 = vsel %vm501, %v1491, 0
        %v1522 = vsel %vm501, %v1494, 0
        %v1525 = vsel %vm501, %v1497, 0
        %v1528 = vsel %vm501, %v1500, 0
        %v1531 = vsel %vm501, %v1503, 0
        %1533 = vmatpush.msra.mxu0 0.0
        %1534 = vmatpush.msra.mxu0 0.0
        %1535 = vmatpush.msra.mxu0 0.0
        %1536 = vmatpush.msra.mxu0 0.0
        %1537 = vmatpush.msra.mxu0 0.0
        %1538 = vmatpush.msra.mxu0 0.0
        %1539 = vmatpush.msra.mxu0 0.0
        %1540 = vmatpush.msra.mxu0 0.0
        %1541 = vmatpush.msra.mxu0 0.0
        %1542 = vmatpush.msra.mxu0 0.0
        %1543 = vmatpush.msra.mxu0 0.0
        %1544 = vmatpush.msra.mxu0 0.0
        %1545 = vmatpush.msra.mxu0 %v1508
        %1546 = vmatpush.msra.mxu0 %v1507
        %1547 = vmatpush.msra.mxu0 %v1506
        %1548 = vmatpush.msra.mxu0 %v1505
        %1549 = vmatmul.f32.gmra.mxu0 %v1510
        %v1550 = vpop.f32.mrf.mxu0
        %v1551 = vadd.f32 0.0, %v1550
        %1552 = vmatmul.f32.gmra.mxu0 %v1513
        %v1553 = vpop.f32.mrf.mxu0
        %v1554 = vadd.f32 0.0, %v1553
        %1555 = vmatmul.f32.gmra.mxu0 %v1516
        %v1556 = vpop.f32.mrf.mxu0
        %v1557 = vadd.f32 0.0, %v1556
        %1558 = vmatmul.f32.gmra.mxu0 %v1519
        %v1559 = vpop.f32.mrf.mxu0
        %v1560 = vadd.f32 0.0, %v1559
        %1561 = vmatmul.f32.gmra.mxu0 %v1522
        %v1562 = vpop.f32.mrf.mxu0
        %v1563 = vadd.f32 0.0, %v1562
        %1564 = vmatmul.f32.gmra.mxu0 %v1525
        %v1565 = vpop.f32.mrf.mxu0
        %v1566 = vadd.f32 0.0, %v1565
        %1567 = vmatmul.f32.gmra.mxu0 %v1528
        %v1568 = vpop.f32.mrf.mxu0
        %v1569 = vadd.f32 0.0, %v1568
        %1570 = vmatmul.f32.gmra.mxu0 %v1531
        %v1571 = vpop.f32.mrf.mxu0
        %v1572 = vadd.f32 0.0, %v1571
        %1573 = vdwg.mxu0
        %v1574 = vadd.f32 %v1384, %v1551
        %v1575 = vadd.f32 %v1385, %v1554
        %v1576 = vadd.f32 %v1386, %v1557
        %v1577 = vadd.f32 %v1387, %v1560
        %v1578 = vadd.f32 %v1388, %v1563
        %v1579 = vadd.f32 %v1389, %v1566
        %v1580 = vadd.f32 %v1390, %v1569
        %v1581 = vadd.f32 %v1391, %v1572
        %1582 = vset.pattern.permute.xlu0 7
        %1583 = vperm.xlu0 %1582, %v258
        %v1584 = vpop.permute.xlu0 %1583
        %1585 = vset.pattern.permute.xlu0 7
        %1586 = vperm.xlu0 %1585, %v259
        %v1587 = vpop.permute.xlu0 %1586
        %1588 = vset.pattern.permute.xlu0 7
        %1589 = vperm.xlu0 %1588, %v260
        %v1590 = vpop.permute.xlu0 %1589
        %1591 = vset.pattern.permute.xlu0 7
        %1592 = vperm.xlu0 %1591, %v261
        %v1593 = vpop.permute.xlu0 %1592
        %1594 = vset.pattern.permute.xlu0 7
        %1595 = vperm.xlu0 %1594, %v262
        %v1596 = vpop.permute.xlu0 %1595
        %1597 = vset.pattern.permute.xlu0 7
        %1598 = vperm.xlu0 %1597, %v263
        %v1599 = vpop.permute.xlu0 %1598
        %1600 = vset.pattern.permute.xlu0 7
        %1601 = vperm.xlu0 %1600, %v264
        %v1602 = vpop.permute.xlu0 %1601
        %1603 = vset.pattern.permute.xlu0 7
        %1604 = vperm.xlu0 %1603, %v265
        %v1605 = vpop.permute.xlu0 %1604
        %vm1606 = vcmp.eq.s32.totalorder %v257, %v1584
        %vm1607 = vcmp.eq.s32.totalorder %v257, %v1587
        %vm1608 = vcmp.eq.s32.totalorder %v257, %v1590
        %vm1609 = vcmp.eq.s32.totalorder %v257, %v1593
        %vm1610 = vcmp.eq.s32.totalorder %v257, %v1596
        %vm1611 = vcmp.eq.s32.totalorder %v257, %v1599
        %vm1612 = vcmp.eq.s32.totalorder %v257, %v1602
        %vm1613 = vcmp.eq.s32.totalorder %v257, %v1605
        %v1614 = vsel %vm1606, 1, 0
        %v1615 = vsel %vm1607, 1, 0
        %v1616 = vsel %vm1608, 1, 0
        %v1617 = vsel %vm1609, 1, 0
        %v1618 = vsel %vm1610, 1, 0
        %v1619 = vsel %vm1611, 1, 0
        %v1620 = vsel %vm1612, 1, 0
        %v1621 = vsel %vm1613, 1, 0
        %v1622 = vcvt.s32.f32 %v1614
        %v1623 = vcvt.s32.f32 %v1615
        %v1624 = vcvt.s32.f32 %v1616
        %v1625 = vcvt.s32.f32 %v1617
        %v1626 = vcvt.s32.f32 %v1618
        %v1627 = vcvt.s32.f32 %v1619
        %v1628 = vcvt.s32.f32 %v1620
        %v1629 = vcvt.s32.f32 %v1621
        %v1631 = vsel %vm314, %v1622, 0
        %v1634 = vsel %vm314, %v1623, 0
        %v1637 = vsel %vm314, %v1624, 0
        %v1640 = vsel %vm314, %v1625, 0
        %v1643 = vsel %vm314, %v1626, 0
        %v1646 = vsel %vm314, %v1627, 0
        %v1649 = vsel %vm314, %v1628, 0
        %v1652 = vsel %vm314, %v1629, 0
        %1654 = vmatpush.msra.mxu0 0.0
        %1655 = vmatpush.msra.mxu0 0.0
        %1656 = vmatpush.msra.mxu0 0.0
        %1657 = vmatpush.msra.mxu0 0.0
        %1658 = vmatpush.msra.mxu0 0.0
        %1659 = vmatpush.msra.mxu0 0.0
        %1660 = vmatpush.msra.mxu0 0.0
        %1661 = vmatpush.msra.mxu0 0.0
        %1662 = vmatpush.msra.mxu0 0.0
        %1663 = vmatpush.msra.mxu0 0.0
        %1664 = vmatpush.msra.mxu0 0.0
        %1665 = vmatpush.msra.mxu0 0.0
        %1666 = vmatpush.msra.mxu0 0.0
        %1667 = vmatpush.msra.mxu0 %v255
        %1668 = vmatpush.msra.mxu0 %v254
        %1669 = vmatpush.msra.mxu0 %v253
        %1670 = vmatmul.f32.gmra.mxu0 %v1631
        %v1671 = vpop.f32.mrf.mxu0
        %v1672 = vadd.f32 0.0, %v1671
        %1673 = vmatmul.f32.gmra.mxu0 %v1634
        %v1674 = vpop.f32.mrf.mxu0
        %v1675 = vadd.f32 0.0, %v1674
        %1676 = vmatmul.f32.gmra.mxu0 %v1637
        %v1677 = vpop.f32.mrf.mxu0
        %v1678 = vadd.f32 0.0, %v1677
        %1679 = vmatmul.f32.gmra.mxu0 %v1640
        %v1680 = vpop.f32.mrf.mxu0
        %v1681 = vadd.f32 0.0, %v1680
        %1682 = vmatmul.f32.gmra.mxu0 %v1643
        %v1683 = vpop.f32.mrf.mxu0
        %v1684 = vadd.f32 0.0, %v1683
        %1685 = vmatmul.f32.gmra.mxu0 %v1646
        %v1686 = vpop.f32.mrf.mxu0
        %v1687 = vadd.f32 0.0, %v1686
        %1688 = vmatmul.f32.gmra.mxu0 %v1649
        %v1689 = vpop.f32.mrf.mxu0
        %v1690 = vadd.f32 0.0, %v1689
        %1691 = vmatmul.f32.gmra.mxu0 %v1652
        %v1692 = vpop.f32.mrf.mxu0
        %v1693 = vadd.f32 0.0, %v1692
        %1694 = vdwg.mxu0
        %v1695 = vld [vmem:[%s2 + $0xe0] sm:$0xff]
        %v1696 = vld [vmem:[%s2 + $0xe8] sm:$0xff]
        %v1697 = vld [vmem:[%s2 + $0xf0] sm:$0xff]
        %v1698 = vld [vmem:[%s2 + $0xf8] sm:$0xff]
        %v1700 = vsel %vm501, %v1672, 0
        %v1703 = vsel %vm501, %v1675, 0
        %v1706 = vsel %vm501, %v1678, 0
        %v1709 = vsel %vm501, %v1681, 0
        %v1712 = vsel %vm501, %v1684, 0
        %v1715 = vsel %vm501, %v1687, 0
        %v1718 = vsel %vm501, %v1690, 0
        %v1721 = vsel %vm501, %v1693, 0
        %1723 = vmatpush.msra.mxu0 0.0
        %1724 = vmatpush.msra.mxu0 0.0
        %1725 = vmatpush.msra.mxu0 0.0
        %1726 = vmatpush.msra.mxu0 0.0
        %1727 = vmatpush.msra.mxu0 0.0
        %1728 = vmatpush.msra.mxu0 0.0
        %1729 = vmatpush.msra.mxu0 0.0
        %1730 = vmatpush.msra.mxu0 0.0
        %1731 = vmatpush.msra.mxu0 0.0
        %1732 = vmatpush.msra.mxu0 0.0
        %1733 = vmatpush.msra.mxu0 0.0
        %1734 = vmatpush.msra.mxu0 0.0
        %1735 = vmatpush.msra.mxu0 %v1698
        %1736 = vmatpush.msra.mxu0 %v1697
        %1737 = vmatpush.msra.mxu0 %v1696
        %1738 = vmatpush.msra.mxu0 %v1695
        %1739 = vmatmul.f32.gmra.mxu0 %v1700
        %v1740 = vpop.f32.mrf.mxu0
        %v1741 = vadd.f32 0.0, %v1740
        %1742 = vmatmul.f32.gmra.mxu0 %v1703
        %v1743 = vpop.f32.mrf.mxu0
        %v1744 = vadd.f32 0.0, %v1743
        %1745 = vmatmul.f32.gmra.mxu0 %v1706
        %v1746 = vpop.f32.mrf.mxu0
        %v1747 = vadd.f32 0.0, %v1746
        %1748 = vmatmul.f32.gmra.mxu0 %v1709
        %v1749 = vpop.f32.mrf.mxu0
        %v1750 = vadd.f32 0.0, %v1749
        %1751 = vmatmul.f32.gmra.mxu0 %v1712
        %v1752 = vpop.f32.mrf.mxu0
        %v1753 = vadd.f32 0.0, %v1752
        %1754 = vmatmul.f32.gmra.mxu0 %v1715
        %v1755 = vpop.f32.mrf.mxu0
        %v1756 = vadd.f32 0.0, %v1755
        %1757 = vmatmul.f32.gmra.mxu0 %v1718
        %v1758 = vpop.f32.mrf.mxu0
        %v1759 = vadd.f32 0.0, %v1758
        %1760 = vmatmul.f32.gmra.mxu0 %v1721
        %v1761 = vpop.f32.mrf.mxu0
        %v1762 = vadd.f32 0.0, %v1761
        %1763 = vdwg.mxu0
        %v1764 = vadd.f32 %v1574, %v1741
        %v1765 = vadd.f32 %v1575, %v1744
        %v1766 = vadd.f32 %v1576, %v1747
        %v1767 = vadd.f32 %v1577, %v1750
        %v1768 = vadd.f32 %v1578, %v1753
        %v1769 = vadd.f32 %v1579, %v1756
        %v1770 = vadd.f32 %v1580, %v1759
        %v1771 = vadd.f32 %v1581, %v1762
        %v1772 = vld [vmem:[%s3] sm:$0x1]
        %v1774 = vperm.slane %v1772, 0
        %v1776 = vadd.f32 %v1764, %v1774
        %v1777 = vadd.f32 %v1765, %v1774
        %v1778 = vadd.f32 %v1766, %v1774
        %v1779 = vadd.f32 %v1767, %v1774
        %v1780 = vadd.f32 %v1768, %v1774
        %v1781 = vadd.f32 %v1769, %v1774
        %v1782 = vadd.f32 %v1770, %v1774
        %v1783 = vadd.f32 %v1771, %v1774
        %v1784 = vmax.f32 %v1776, 0.0
        %v1785 = vmax.f32 %v1777, 0.0
        %v1786 = vmax.f32 %v1778, 0.0
        %v1787 = vmax.f32 %v1779, 0.0
        %v1788 = vmax.f32 %v1780, 0.0
        %v1789 = vmax.f32 %v1781, 0.0
        %v1790 = vmax.f32 %v1782, 0.0
        %v1791 = vmax.f32 %v1783, 0.0
        %v1792 = vld [vmem:[%s4] sm:$0xff]
        %v1793 = vld [vmem:[%s4 + $0x8] sm:$0xff]
        %v1794 = vld [vmem:[%s4 + $0x10] sm:$0xff]
        %v1795 = vld [vmem:[%s4 + $0x18] sm:$0xff]
        %v1796 = vld [vmem:[%s5] sm:$0x1]
        %v1798 = vperm.slane %v1796, 0
        %v1801 = vsel %vm501, %v1784, 0
        %v1804 = vsel %vm501, %v1785, 0
        %v1807 = vsel %vm501, %v1786, 0
        %v1810 = vsel %vm501, %v1787, 0
        %v1813 = vsel %vm501, %v1788, 0
        %v1816 = vsel %vm501, %v1789, 0
        %v1819 = vsel %vm501, %v1790, 0
        %v1822 = vsel %vm501, %v1791, 0
        %1824 = vmatpush.msra.mxu0 0.0
        %1825 = vmatpush.msra.mxu0 0.0
        %1826 = vmatpush.msra.mxu0 0.0
        %1827 = vmatpush.msra.mxu0 0.0
        %1828 = vmatpush.msra.mxu0 0.0
        %1829 = vmatpush.msra.mxu0 0.0
        %1830 = vmatpush.msra.mxu0 0.0
        %1831 = vmatpush.msra.mxu0 0.0
        %1832 = vmatpush.msra.mxu0 0.0
        %1833 = vmatpush.msra.mxu0 0.0
        %1834 = vmatpush.msra.mxu0 0.0
        %1835 = vmatpush.msra.mxu0 0.0
        %1836 = vmatpush.msra.mxu0 %v1795
        %1837 = vmatpush.msra.mxu0 %v1794
        %1838 = vmatpush.msra.mxu0 %v1793
        %1839 = vmatpush.msra.mxu0 %v1792
        %1840 = vmatmul.f32.gmra.mxu0 %v1801
        %v1841 = vpop.f32.mrf.mxu0
        %v1842 = vadd.f32 %v1798, %v1841
        %1843 = vmatmul.f32.gmra.mxu0 %v1804
        %v1844 = vpop.f32.mrf.mxu0
        %v1845 = vadd.f32 %v1798, %v1844
        %1846 = vmatmul.f32.gmra.mxu0 %v1807
        %v1847 = vpop.f32.mrf.mxu0
        %v1848 = vadd.f32 %v1798, %v1847
        %1849 = vmatmul.f32.gmra.mxu0 %v1810
        %v1850 = vpop.f32.mrf.mxu0
        %v1851 = vadd.f32 %v1798, %v1850
        %1852 = vmatmul.f32.gmra.mxu0 %v1813
        %v1853 = vpop.f32.mrf.mxu0
        %v1854 = vadd.f32 %v1798, %v1853
        %1855 = vmatmul.f32.gmra.mxu0 %v1816
        %v1856 = vpop.f32.mrf.mxu0
        %v1857 = vadd.f32 %v1798, %v1856
        %1858 = vmatmul.f32.gmra.mxu0 %v1819
        %v1859 = vpop.f32.mrf.mxu0
        %v1860 = vadd.f32 %v1798, %v1859
        %1861 = vmatmul.f32.gmra.mxu0 %v1822
        %v1862 = vpop.f32.mrf.mxu0
        %v1863 = vadd.f32 %v1798, %v1862
        %1864 = vdwg.mxu0
        %vm1865 = vcmp.lt.s32.totalorder %v257, 4
        %v1866 = vsel %vm1865, %v1842, -inf
        %v1867 = vsel %vm1865, %v1845, -inf
        %v1868 = vsel %vm1865, %v1848, -inf
        %v1869 = vsel %vm1865, %v1851, -inf
        %v1870 = vsel %vm1865, %v1854, -inf
        %v1871 = vsel %vm1865, %v1857, -inf
        %v1872 = vsel %vm1865, %v1860, -inf
        %v1873 = vsel %vm1865, %v1863, -inf
        %1874 = vmax.xlane.f32.xlu0 %v1866
        %v1875 = vpop.xlane.xlu0 %1874
        %1876 = vmax.xlane.f32.xlu0 %v1867
        %v1877 = vpop.xlane.xlu0 %1876
        %1878 = vmax.xlane.f32.xlu0 %v1868
        %v1879 = vpop.xlane.xlu0 %1878
        %1880 = vmax.xlane.f32.xlu0 %v1869
        %v1881 = vpop.xlane.xlu0 %1880
        %1882 = vmax.xlane.f32.xlu0 %v1870
        %v1883 = vpop.xlane.xlu0 %1882
        %1884 = vmax.xlane.f32.xlu0 %v1871
        %v1885 = vpop.xlane.xlu0 %1884
        %1886 = vmax.xlane.f32.xlu0 %v1872
        %v1887 = vpop.xlane.xlu0 %1886
        %1888 = vmax.xlane.f32.xlu0 %v1873
        %v1889 = vpop.xlane.xlu0 %1888
        %v1890 = vsub.f32 %v1842, %v1875
        %v1891 = vsub.f32 %v1845, %v1877
        %v1892 = vsub.f32 %v1848, %v1879
        %v1893 = vsub.f32 %v1851, %v1881
        %v1894 = vsub.f32 %v1854, %v1883
        %v1895 = vsub.f32 %v1857, %v1885
        %v1896 = vsub.f32 %v1860, %v1887
        %v1897 = vsub.f32 %v1863, %v1889
        %v1898 = vmul.f32 %v1890, 1.442695
        %v1899 = vpow.pop %v1898
        %v1900 = vmul.f32 %v1891, 1.442695
        %v1901 = vpow.pop %v1900
        %v1902 = vmul.f32 %v1892, 1.442695
        %v1903 = vpow.pop %v1902
        %v1904 = vmul.f32 %v1893, 1.442695
        %v1905 = vpow.pop %v1904
        %v1906 = vmul.f32 %v1894, 1.442695
        %v1907 = vpow.pop %v1906
        %v1908 = vmul.f32 %v1895, 1.442695
        %v1909 = vpow.pop %v1908
        %v1910 = vmul.f32 %v1896, 1.442695
        %v1911 = vpow.pop %v1910
        %v1912 = vmul.f32 %v1897, 1.442695
        %v1913 = vpow.pop %v1912
        %v1914 = vsel %vm1865, %v1899, 0.0
        %v1915 = vsel %vm1865, %v1901, 0.0
        %v1916 = vsel %vm1865, %v1903, 0.0
        %v1917 = vsel %vm1865, %v1905, 0.0
        %v1918 = vsel %vm1865, %v1907, 0.0
        %v1919 = vsel %vm1865, %v1909, 0.0
        %v1920 = vsel %vm1865, %v1911, 0.0
        %v1921 = vsel %vm1865, %v1913, 0.0
        %1922 = vadd.xlane.f32.xlu0 %v1914
        %v1923 = vpop.xlane.xlu0 %1922
        %1924 = vadd.xlane.f32.xlu0 %v1915
        %v1925 = vpop.xlane.xlu0 %1924
        %1926 = vadd.xlane.f32.xlu0 %v1916
        %v1927 = vpop.xlane.xlu0 %1926
        %1928 = vadd.xlane.f32.xlu0 %v1917
        %v1929 = vpop.xlane.xlu0 %1928
        %1930 = vadd.xlane.f32.xlu0 %v1918
        %v1931 = vpop.xlane.xlu0 %1930
        %1932 = vadd.xlane.f32.xlu0 %v1919
        %v1933 = vpop.xlane.xlu0 %1932
        %1934 = vadd.xlane.f32.xlu0 %v1920
        %v1935 = vpop.xlane.xlu0 %1934
        %1936 = vadd.xlane.f32.xlu0 %v1921
        %v1937 = vpop.xlane.xlu0 %1936
        %v1938 = vlog2.pop %v1923
        %v1939 = vmul.f32 %v1938, 0.6931472
        %v1940 = vlog2.pop %v1925
        %v1941 = vmul.f32 %v1940, 0.6931472
        %v1942 = vlog2.pop %v1927
        %v1943 = vmul.f32 %v1942, 0.6931472
        %v1944 = vlog2.pop %v1929
        %v1945 = vmul.f32 %v1944, 0.6931472
        %v1946 = vlog2.pop %v1931
        %v1947 = vmul.f32 %v1946, 0.6931472
        %v1948 = vlog2.pop %v1933
        %v1949 = vmul.f32 %v1948, 0.6931472
        %v1950 = vlog2.pop %v1935
        %v1951 = vmul.f32 %v1950, 0.6931472
        %v1952 = vlog2.pop %v1937
        %v1953 = vmul.f32 %v1952, 0.6931472
        %v1954 = vsub.f32 %v1890, %v1939
        %v1955 = vsub.f32 %v1891, %v1941
        %v1956 = vsub.f32 %v1892, %v1943
        %v1957 = vsub.f32 %v1893, %v1945
        %v1958 = vsub.f32 %v1894, %v1947
        %v1959 = vsub.f32 %v1895, %v1949
        %v1960 = vsub.f32 %v1896, %v1951
        %v1961 = vsub.f32 %v1897, %v1953
        %1962 = vst [vmem:[%s245] sm:$0xff] %v1954
        %1963 = vst [vmem:[%s245 + $0x8] sm:$0xff] %v1955
        %1964 = vst [vmem:[%s245 + $0x10] sm:$0xff] %v1956
        %1965 = vst [vmem:[%s245 + $0x18] sm:$0xff] %v1957
        %1966 = vst [vmem:[%s245 + $0x20] sm:$0xff] %v1958
        %1967 = vst [vmem:[%s245 + $0x28] sm:$0xff] %v1959
        %1968 = vst [vmem:[%s245 + $0x30] sm:$0xff] %v1960
        %1969 = vst [vmem:[%s245 + $0x38] sm:$0xff] %v1961
        %s1970 = sand.u32 %s159, 1
        %s1971 = scalar_lea.sflag [#allocation3], %s1970
        %s1972 = sand.u32 %s159, 1
        %s1973 = smul.addr %s1972, 64
        %s1974 = scalar_lea.vmem [#allocation2], %s1973
        // Predicated region
        $region45: #{tpu_custom_call.1} parent=43 // pred_check
          %p1975 = pneg %p169
        $region46: #{tpu_custom_call.1} parent=43 // pred_check_branch
          %1977 = sbr.rel (%p1975) target = $region48
        $region47: #{tpu_custom_call.1} parent=43 // pred_region
          %s1978 = smul.u32 8, %s20
          %1980 = vsyncadd %s1971, 0
          %s1981 = smul.addr %s1978, 8
          %s1982 = scalar_lea.hbm %s6, %s1981
          %s1983 = sshll.u32 %s1974, 4
          %s1984 = int_to_ptr.vmem [resolvable:$true] %s1983
          %s1985 = sshll.u32 %s1982, 4
          %s1986 = int_to_ptr.hbm [resolvable:$true] %s1985
          %1991 = dma.vmem_to_hbm [thread:$0]  %s1984, 1024, %s1986, %s1971, 128, 128, 8
        $region48: #{tpu_custom_call.1} parent=43 // pred_fallthru
          _
      $region44: #{tpu_custom_call.1} parent=5 // pred_fallthru
        _
      %p1992 = scmp.le.s32.totalorder 2, %s15
      // Predicated region
      $region49: #{tpu_custom_call.1} parent=5 // pred_check
        %p1993 = pneg %p1992
      $region50: #{tpu_custom_call.1} parent=5 // pred_check_branch
        %1995 = sbr.rel (%p1993) target = $region52
      $region51: #{tpu_custom_call.1} parent=5 // pred_region
        %s1996 = ssub.s32 %s15, 2
        // Predicated region
        $region53: #{tpu_custom_call.1} parent=51 // pred_check
          %p1997 = pneg %p175
        $region54: #{tpu_custom_call.1} parent=51 // pred_check_branch
          %1999 = sbr.rel (%p1997) target = $region56
        $region55: #{tpu_custom_call.1} parent=51 // pred_region
          %s2000 = sand.u32 %s160, 1
          %s2001 = scalar_lea.sflag [#allocation3], %s2000
          %s2002 = sand.u32 %s160, 1
          %s2003 = smul.addr %s2002, 64
          %s2004 = scalar_lea.vmem [#allocation2], %s2003
          %2006 = dma.done %s2001, 1024
        $region56: #{tpu_custom_call.1} parent=51 // pred_fallthru
          _
      $region52: #{tpu_custom_call.1} parent=5 // pred_fallthru
        _
    $region6: #{tpu_custom_call.1} parent=1 // loop_footer
      %s19 = sadd.s32 1, %s15
    $region7: #{tpu_custom_call.1} parent=1 // loop_footer_branch
      %14 = sbr.rel target = $region3
    $region8: #{tpu_custom_call.1} parent=1 // loop_exit
      _
    %2007 = vsyncpa [#allocation3], 1
    %s2008 = scalar_lea.sflag [#allocation3], 1
    %2009 = vsyncpa %s2008, 1

</llo_original>
